<compile_context>
chip_gen: v7x
topology: tpu7x:2x2x1
jax: 0.10.0
libtpu: 0.0.40
codegen_flags: <defaults>
</compile_context>

<pallas_src>
import functools
import math

import jax
import jax.numpy as jnp
from jax.experimental import pallas as pl
from jax.experimental.pallas import tpu as pltpu

# CompilerParams is the current name; fall back gracefully on older jax.
_CompilerParams = getattr(pltpu, "CompilerParams", None) or getattr(
    pltpu, "TPUCompilerParams")


def _vmem_capacity_bytes():
    try:
        return int(pltpu.get_tpu_info().vmem_capacity_bytes)
    except Exception:
        return 128 * 1024 * 1024   # v5e / v6e physical VMEM


_VMEM_CAP = _vmem_capacity_bytes()


def _row_budget():
    # Smaller row tiles on 64 MiB-VMEM chips (v7x), larger elsewhere.
    return 256 if _VMEM_CAP <= 64 * 1024 * 1024 else 512


def _row_tile(n, cap):
    cap = max(8, (cap // 8) * 8)
    return n if n <= cap else cap


def _clamp_vmem(nbytes):
    lo = 32 * 1024 * 1024
    hi = max(lo, int(0.9 * _VMEM_CAP))
    return int(min(max(int(nbytes), lo), hi))


# ----------------------------------------------------------------------------
# Kernel 1a: LayerNorm1 + qkv linear + residual proj + q_stride max-pool
# (used when dim != dim_out, i.e. the block has a projection / pooling)
# ----------------------------------------------------------------------------
def _norm_qkv_proj_kernel(x_ref, g_ref, b_ref, wq_ref, bq_ref, wp_ref, bp_ref,
                          qkv_ref, res_ref, *, eps):
    # x_ref: (S, bn, dim); token n == s * Npool + m (PyTorch view order)
    g = g_ref[...].astype(jnp.float32)
    b = b_ref[...].astype(jnp.float32)
    wq = wq_ref[...]
    bq = bq_ref[...].astype(jnp.float32)
    wp = wp_ref[...]
    bp = bp_ref[...].astype(jnp.float32)
    S = x_ref.shape[0]

    def body(s, running_max):
        xs = x_ref[s].astype(jnp.float32)                       # (bn, dim)
        mean = jnp.mean(xs, axis=-1, keepdims=True)
        xc = xs - mean
        var = jnp.mean(xc * xc, axis=-1, keepdims=True)
        ln = (xc * jax.lax.rsqrt(var + eps)) * g + b
        ln = ln.astype(wq.dtype)
        qkv = jnp.dot(ln, wq, preferred_element_type=jnp.float32) + bq
        qkv_ref[s] = qkv.astype(qkv_ref.dtype)
        xr = jnp.dot(ln, wp, preferred_element_type=jnp.float32) + bp
        return jnp.maximum(running_max, xr)

    init = jnp.full(res_ref.shape, -jnp.inf, jnp.float32)
    res = jax.lax.fori_loop(0, S, body, init, unroll=True)
    res_ref[...] = res.astype(res_ref.dtype)


def fused_norm_qkv_proj(x4, g1, b1, wq, bq, wp, bp, eps=1e-5):
    # x4: (B, q_stride, Npool, dim)
    B, S, Npool, dim = x4.shape
    F3 = wq.shape[1]
    Fo = wp.shape[1]
    # effective rows per grid step are S*bn -> divide the budget by S
    bn = _row_tile(Npool, cap=max(8, _row_budget() // S))
    itm = jnp.dtype(x4.dtype).itemsize
    wsz = jnp.dtype(wq.dtype).itemsize
    est = (2 * (S * bn * (dim + F3) + bn * Fo) * itm     # double-buffered tiles
           + 2 * dim * (F3 + Fo) * wsz                   # double-buffered weights
           + 4 * bn * (dim + F3 + 2 * Fo))               # in-kernel f32 temporaries
    return pl.pallas_call(
        functools.partial(_norm_qkv_proj_kernel, eps=eps),
        out_shape=(
            jax.ShapeDtypeStruct((B, S, Npool, F3), x4.dtype),
            jax.ShapeDtypeStruct((B, Npool, Fo), x4.dtype),
        ),
        grid=(B, pl.cdiv(Npool, bn)),
        in_specs=[
            pl.BlockSpec((None, S, bn, dim), lambda bi, i: (bi, 0, i, 0)),
            pl.BlockSpec((1, dim), lambda bi, i: (0, 0)),
            pl.BlockSpec((1, dim), lambda bi, i: (0, 0)),
            pl.BlockSpec((dim, F3), lambda bi, i: (0, 0)),
            pl.BlockSpec((1, F3), lambda bi, i: (0, 0)),
            pl.BlockSpec((dim, Fo), lambda bi, i: (0, 0)),
            pl.BlockSpec((1, Fo), lambda bi, i: (0, 0)),
        ],
        out_specs=[
            pl.BlockSpec((None, S, bn, F3), lambda bi, i: (bi, 0, i, 0)),
            pl.BlockSpec((None, bn, Fo), lambda bi, i: (bi, i, 0)),
        ],
        compiler_params=_CompilerParams(
            dimension_semantics=("parallel", "parallel"),
            vmem_limit_bytes=_clamp_vmem(1.3 * est)),
    )(x4, g1.reshape(1, -1), b1.reshape(1, -1), wq, bq.reshape(1, -1),
      wp, bp.reshape(1, -1))


# ----------------------------------------------------------------------------
# Kernel 1b: LayerNorm1 + qkv linear (no residual projection: dim == dim_out)
# ----------------------------------------------------------------------------
def _norm_qkv_kernel(x_ref, g_ref, b_ref, wq_ref, bq_ref, qkv_ref, *, eps):
    xs = x_ref[...].astype(jnp.float32)
    mean = jnp.mean(xs, axis=-1, keepdims=True)
    xc = xs - mean
    var = jnp.mean(xc * xc, axis=-1, keepdims=True)
    ln = (xc * jax.lax.rsqrt(var + eps)) * g_ref[...].astype(jnp.float32) \
        + b_ref[...].astype(jnp.float32)
    ln = ln.astype(wq_ref.dtype)
    qkv = jnp.dot(ln, wq_ref[...], preferred_element_type=jnp.float32) \
        + bq_ref[...].astype(jnp.float32)
    qkv_ref[...] = qkv.astype(qkv_ref.dtype)


def fused_norm_qkv(x2d, g1, b1, wq, bq, eps=1e-5):
    M, dim = x2d.shape
    F3 = wq.shape[1]
    bm = _row_tile(M, cap=_row_budget())
    itm = jnp.dtype(x2d.dtype).itemsize
    wsz = jnp.dtype(wq.dtype).itemsize
    est = (2 * bm * (dim + F3) * itm + 2 * dim * F3 * wsz + 4 * bm * (dim + F3))
    return pl.pallas_call(
        functools.partial(_norm_qkv_kernel, eps=eps),
        out_shape=jax.ShapeDtypeStruct((M, F3), x2d.dtype),
        grid=(pl.cdiv(M, bm),),
        in_specs=[
            pl.BlockSpec((bm, dim), lambda i: (i, 0)),
            pl.BlockSpec((1, dim), lambda i: (0, 0)),
            pl.BlockSpec((1, dim), lambda i: (0, 0)),
            pl.BlockSpec((dim, F3), lambda i: (0, 0)),
            pl.BlockSpec((1, F3), lambda i: (0, 0)),
        ],
        out_specs=pl.BlockSpec((bm, F3), lambda i: (i, 0)),
        compiler_params=_CompilerParams(
            dimension_semantics=("parallel",),
            vmem_limit_bytes=_clamp_vmem(1.3 * est)),
    )(x2d, g1.reshape(1, -1), b1.reshape(1, -1), wq, bq.reshape(1, -1))


# ----------------------------------------------------------------------------
# Kernel 2: mask-unit attention.  Grid = (B, num_windows); each step reads the
# q/k/v of ONE window straight from the qkv tensor (free view, no XLA
# transpose) and writes its output into a token-major-compatible layout.
# ----------------------------------------------------------------------------
def _attn_kernel(qkv_ref, o_ref, *, scale):
    # qkv_ref: (S, Lq, 3, heads, hd)  -- q/k/v for one (batch, window) pair
    # o_ref:   (Lq, heads, hd)
    S, Lq, _, H, hd = qkv_ref.shape
    L = S * Lq
    q = qkv_ref[:, :, 0].astype(jnp.float32)                  # (S, Lq, H, hd)
    q = jnp.max(q, axis=0) * scale                            # q_stride max-pool
    k = qkv_ref[:, :, 1].reshape(L, H, hd)
    v = qkv_ref[:, :, 2].reshape(L, H, hd)
    s = jnp.einsum("qhd,khd->hqk", q.astype(k.dtype), k,
                   preferred_element_type=jnp.float32)        # (H, Lq, L)
    s = s - jnp.max(s, axis=-1, keepdims=True)
    p = jnp.exp(s)
    p = p * pl.reciprocal(jnp.sum(p, axis=-1, keepdims=True), approx=False)
    o = jnp.einsum("hqk,khd->qhd", p.astype(v.dtype), v,
                   preferred_element_type=jnp.float32)        # (Lq, H, hd)
    o_ref[...] = o.astype(o_ref.dtype)


def fused_attention(qkv7, *, scale):
    # qkv7: (B, S, Lq, nw, 3, heads, hd)  ->  (B, Lq, nw, heads, hd)
    B, S, Lq, nw, _, H, hd = qkv7.shape
    return pl.pallas_call(
        functools.partial(_attn_kernel, scale=scale),
        out_shape=jax.ShapeDtypeStruct((B, Lq, nw, H, hd), qkv7.dtype),
        grid=(B, nw),
        in_specs=[
            pl.BlockSpec((None, S, Lq, None, 3, H, hd),
                         lambda b, w: (b, 0, 0, w, 0, 0, 0)),
        ],
        out_specs=pl.BlockSpec((None, Lq, None, H, hd),
                               lambda b, w: (b, 0, w, 0, 0)),
        compiler_params=_CompilerParams(
            dimension_semantics=("parallel", "parallel")),
    )(qkv7)


# ----------------------------------------------------------------------------
# Kernel 3: attn proj + residual add + LayerNorm2 + fc1 + GELU + fc2 + residual
# ----------------------------------------------------------------------------
def _proj_res_mlp_kernel(o_ref, r_ref, wp_ref, bp_ref, g_ref, b_ref,
                         w1_ref, b1_ref, w2_ref, b2_ref, out_ref, *, eps):
    attn = jnp.dot(o_ref[...], wp_ref[...], preferred_element_type=jnp.float32) \
        + bp_ref[...].astype(jnp.float32)
    x = r_ref[...].astype(jnp.float32) + attn              # x_res + attn(x_norm)
    mean = jnp.mean(x, axis=-1, keepdims=True)
    xc = x - mean
    var = jnp.mean(xc * xc, axis=-1, keepdims=True)
    ln = (xc * jax.lax.rsqrt(var + eps)) * g_ref[...].astype(jnp.float32) \
        + b_ref[...].astype(jnp.float32)
    h = jnp.dot(ln.astype(w1_ref.dtype), w1_ref[...],
                preferred_element_type=jnp.float32) + b1_ref[...].astype(jnp.float32)
    # exact GELU (erf form), matching nn.GELU() default
    h = 0.5 * h * (1.0 + jax.lax.erf(h * (1.0 / math.sqrt(2.0))))
    m = jnp.dot(h.astype(w2_ref.dtype), w2_ref[...],
                preferred_element_type=jnp.float32) + b2_ref[...].astype(jnp.float32)
    out_ref[...] = (x + m).astype(out_ref.dtype)


def fused_proj_res_mlp(o2d, res2d, wp, bp, g2, b2, w1, b1, w2, b2f, eps=1e-5):
    M, D = o2d.shape
    H = w1.shape[1]
    bm = _row_tile(M, cap=_row_budget())
    itm = jnp.dtype(o2d.dtype).itemsize
    wsz = jnp.dtype(wp.dtype).itemsize
    est = (2 * 3 * bm * D * itm                      # o / res / out tiles, double-buffered
           + 2 * (D * D + 2 * D * H) * wsz           # weights, double-buffered
           + 4 * bm * (3 * D + 2 * H))               # f32 intermediates incl. GELU
    # TODO(synk): for very large dim_out (e.g. 768, mlp 4x) in f32, pass bf16
    # weights and/or add a K-split grid axis that streams w1/w2 in H-chunks so
    # the resident weight footprint fits v7x's 64 MiB VMEM.
    return pl.pallas_call(
        functools.partial(_proj_res_mlp_kernel, eps=eps),
        out_shape=jax.ShapeDtypeStruct((M, D), o2d.dtype),
        grid=(pl.cdiv(M, bm),),
        in_specs=[
            pl.BlockSpec((bm, D), lambda i: (i, 0)),
            pl.BlockSpec((bm, D), lambda i: (i, 0)),
            pl.BlockSpec((D, D), lambda i: (0, 0)),
            pl.BlockSpec((1, D), lambda i: (0, 0)),
            pl.BlockSpec((1, D), lambda i: (0, 0)),
            pl.BlockSpec((1, D), lambda i: (0, 0)),
            pl.BlockSpec((D, H), lambda i: (0, 0)),
            pl.BlockSpec((1, H), lambda i: (0, 0)),
            pl.BlockSpec((H, D), lambda i: (0, 0)),
            pl.BlockSpec((1, D), lambda i: (0, 0)),
        ],
        out_specs=pl.BlockSpec((bm, D), lambda i: (i, 0)),
        compiler_params=_CompilerParams(
            dimension_semantics=("parallel",),
            vmem_limit_bytes=_clamp_vmem(1.3 * est)),
    )(o2d, res2d, wp, bp.reshape(1, -1), g2.reshape(1, -1), b2.reshape(1, -1),
      w1, b1.reshape(1, -1), w2, b2f.reshape(1, -1))


# ----------------------------------------------------------------------------
# HieraBlock forward (Pallas)
# ----------------------------------------------------------------------------
def hiera_block_pallas(x, p, *, heads, q_stride, window_size, use_mask_unit_attn):
    B, N, dim = x.shape
    dim_out = p["qkv_w"].shape[1] // 3
    head_dim = dim_out // heads
    scale = head_dim ** (-0.5)
    has_proj = dim != dim_out

    nw = N // (q_stride * window_size) if use_mask_unit_attn else 1
    S = q_stride
    L = N // nw
    Lq = L // S
    Npool = Lq * nw                       # tokens after q-pooling (= N // q_stride)

    if not has_proj and q_stride != 1:
        # PyTorch would fail with a residual shape mismatch here too.
        raise ValueError("q_stride > 1 requires dim != dim_out (projection path)")

    # ---- K1: norm1 + qkv (+ residual proj + q_stride max-pool) ----
    if has_proj:
        x4 = x.reshape(B, S, Npool, dim)                       # free view
        qkv, x_res = fused_norm_qkv_proj(
            x4, p["norm1_g"], p["norm1_b"], p["qkv_w"], p["qkv_b"],
            p["proj_w"], p["proj_b"])                          # (B,S,Npool,3*Do), (B,Npool,Do)
    else:
        qkv = fused_norm_qkv(
            x.reshape(B * N, dim), p["norm1_g"], p["norm1_b"],
            p["qkv_w"], p["qkv_b"]).reshape(B, 1, N, 3 * dim_out)
        x_res = x                                              # q_stride == 1 here

    # ---- K2: windowed attention, gridded over (B, nw); the reshapes below are
    # free views, so no XLA transpose / extra HBM round trip of qkv or o ----
    qkv7 = qkv.reshape(B, S, Lq, nw, 3, heads, head_dim)
    o = fused_attention(qkv7, scale=scale)                     # (B, Lq, nw, heads, hd)
    o2d = o.reshape(B * Npool, dim_out)                        # token r == lq*nw + w

    # ---- K3: attn-proj + residual + norm2 + MLP + residual ----
    # drop_path == identity (inference / p == 0)
    res2d = x_res.reshape(B * Npool, dim_out)
    out2d = fused_proj_res_mlp(
        o2d, res2d, p["attn_proj_w"], p["attn_proj_b"],
        p["norm2_g"], p["norm2_b"],
        p["fc1_w"], p["fc1_b"], p["fc2_w"], p["fc2_b"])
    return out2d.reshape(B, Npool, dim_out)


# ----------------------------------------------------------------------------
# Pure-JAX reference (mirrors the PyTorch semantics) for validation
# ----------------------------------------------------------------------------
def hiera_block_reference(x, p, *, heads, q_stride, window_size, use_mask_unit_attn):
    def ln(x, g, b, eps=1e-5):
        m = jnp.mean(x, -1, keepdims=True)
        v = jnp.mean((x - m) ** 2, -1, keepdims=True)
        return (x - m) / jnp.sqrt(v + eps) * g + b

    def gelu(x):
        return 0.5 * x * (1.0 + jax.lax.erf(x * (1.0 / math.sqrt(2.0))))

    B, N, dim = x.shape
    dim_out = p["qkv_w"].shape[1] // 3
    hd = dim_out // heads
    scale = hd ** (-0.5)

    xn = ln(x, p["norm1_g"], p["norm1_b"])
    if dim != dim_out:
        xr = xn @ p["proj_w"] + p["proj_b"]
        x_res = jnp.max(xr.reshape(B, q_stride, -1, dim_out), axis=1)
    else:
        x_res = x

    nw = N // (q_stride * window_size) if use_mask_unit_attn else 1
    L = N // nw
    qkv = (xn @ p["qkv_w"] + p["qkv_b"]).reshape(B, L, nw, 3, heads, hd)
    qkv = jnp.transpose(qkv, (3, 0, 4, 2, 1, 5))
    q, k, v = qkv[0], qkv[1], qkv[2]
    if q_stride > 1:
        q = jnp.max(q.reshape(B, heads, nw, q_stride, -1, hd), axis=3)
    s = jnp.einsum("bhwqd,bhwkd->bhwqk", q, k) * scale
    a = jax.nn.softmax(s, axis=-1)
    o = jnp.einsum("bhwqk,bhwkd->bhwqd", a, v)
    o = jnp.transpose(o, (0, 3, 2, 1, 4)).reshape(B, -1, dim_out)
    attn_out = o @ p["attn_proj_w"] + p["attn_proj_b"]

    x = x_res + attn_out
    xn2 = ln(x, p["norm2_g"], p["norm2_b"])
    h = gelu(xn2 @ p["fc1_w"] + p["fc1_b"])
    return x + (h @ p["fc2_w"] + p["fc2_b"])


# ----------------------------------------------------------------------------
if __name__ == "__main__":
    # HieraBlock config (stage-transition block: dim != dim_out, q_stride > 1)
    B, N, dim = 2, 64, 32
    dim_out, heads = 64, 2
    q_stride, window_size = 4, 4
    mlp_ratio = 4.0
    use_mask_unit_attn = True
    hidden = int(dim_out * mlp_ratio)

    key = jax.random.PRNGKey(0)
    k = jax.random.split(key, 12)
    params = {
        "norm1_g": jnp.ones((dim,), jnp.float32),
        "norm1_b": jnp.zeros((dim,), jnp.float32),
        "proj_w": 0.02 * jax.random.normal(k[0], (dim, dim_out), jnp.float32),
        "proj_b": 0.02 * jax.random.normal(k[1], (dim_out,), jnp.float32),
        "qkv_w": 0.02 * jax.random.normal(k[2], (dim, 3 * dim_out), jnp.float32),
        "qkv_b": 0.02 * jax.random.normal(k[3], (3 * dim_out,), jnp.float32),
        "attn_proj_w": 0.02 * jax.random.normal(k[4], (dim_out, dim_out), jnp.float32),
        "attn_proj_b": 0.02 * jax.random.normal(k[5], (dim_out,), jnp.float32),
        "norm2_g": jnp.ones((dim_out,), jnp.float32),
        "norm2_b": jnp.zeros((dim_out,), jnp.float32),
        "fc1_w": 0.02 * jax.random.normal(k[6], (dim_out, hidden), jnp.float32),
        "fc1_b": 0.02 * jax.random.normal(k[7], (hidden,), jnp.float32),
        "fc2_w": 0.02 * jax.random.normal(k[8], (hidden, dim_out), jnp.float32),
        "fc2_b": 0.02 * jax.random.normal(k[9], (dim_out,), jnp.float32),
    }
    x = jax.random.normal(k[10], (B, N, dim), jnp.float32)

    out = hiera_block_pallas(
        x, params, heads=heads, q_stride=q_stride,
        window_size=window_size, use_mask_unit_attn=use_mask_unit_attn,
    )
    out = jax.block_until_ready(out)

    ref = hiera_block_reference(
        x, params, heads=heads, q_stride=q_stride,
        window_size=window_size, use_mask_unit_attn=use_mask_unit_attn,
    )

    assert out.shape == (B, N // q_stride, dim_out), out.shape
    err = float(jnp.max(jnp.abs(out - ref)))
    assert err < 3e-3, f"max abs err {err}"
    print("KERNEL_OK")
</pallas_src>

<mosaic_0001>
module attributes {stable_mosaic.version = 11 : i64} {
  func.func @_norm_qkv_proj_kernel(%arg0: i32, %arg1: i32, %arg2: memref<1x4x16x32xf32, #tpu.memory_space<vmem>>, %arg3: memref<1x32xf32, #tpu.memory_space<vmem>>, %arg4: memref<1x32xf32, #tpu.memory_space<vmem>>, %arg5: memref<32x192xf32, #tpu.memory_space<vmem>>, %arg6: memref<1x192xf32, #tpu.memory_space<vmem>>, %arg7: memref<32x64xf32, #tpu.memory_space<vmem>>, %arg8: memref<1x64xf32, #tpu.memory_space<vmem>>, %arg9: memref<1x4x16x192xf32, #tpu.memory_space<vmem>>, %arg10: memref<1x16x64xf32, #tpu.memory_space<vmem>>) attributes {dimension_semantics = [#tpu.dimension_semantics<parallel>, #tpu.dimension_semantics<parallel>], iteration_bounds = array<i64: 2, 1>, scalar_prefetch = 0 : i64, scratch_operands = 0 : i64, tpu.core_type = #tpu.core_type<tc>, window_params = [{transform_indices = @transform_0, window_bounds = array<i64: 1, 4, 16, 32>}, {pipeline_mode = #tpu.pipeline_mode<synchronous>, transform_indices = @transform_1, window_bounds = array<i64: 1, 32>}, {pipeline_mode = #tpu.pipeline_mode<synchronous>, transform_indices = @transform_2, window_bounds = array<i64: 1, 32>}, {pipeline_mode = #tpu.pipeline_mode<synchronous>, transform_indices = @transform_3, window_bounds = array<i64: 32, 192>}, {pipeline_mode = #tpu.pipeline_mode<synchronous>, transform_indices = @transform_4, window_bounds = array<i64: 1, 192>}, {pipeline_mode = #tpu.pipeline_mode<synchronous>, transform_indices = @transform_5, window_bounds = array<i64: 32, 64>}, {pipeline_mode = #tpu.pipeline_mode<synchronous>, transform_indices = @transform_6, window_bounds = array<i64: 1, 64>}, {transform_indices = @transform_7, window_bounds = array<i64: 1, 4, 16, 192>}, {transform_indices = @transform_8, window_bounds = array<i64: 1, 16, 64>}]} {
    %c0 = arith.constant 0 : index
    %c0_0 = arith.constant 0 : index
    %0 = vector.load %arg3[%c0, %c0_0] : memref<1x32xf32, #tpu.memory_space<vmem>>, vector<1x32xf32>
    %c0_1 = arith.constant 0 : index
    %c0_2 = arith.constant 0 : index
    %1 = vector.load %arg4[%c0_1, %c0_2] : memref<1x32xf32, #tpu.memory_space<vmem>>, vector<1x32xf32>
    %c0_3 = arith.constant 0 : index
    %c0_4 = arith.constant 0 : index
    %2 = vector.load %arg5[%c0_3, %c0_4] : memref<32x192xf32, #tpu.memory_space<vmem>>, vector<32x192xf32>
    %c0_5 = arith.constant 0 : index
    %c0_6 = arith.constant 0 : index
    %3 = vector.load %arg6[%c0_5, %c0_6] : memref<1x192xf32, #tpu.memory_space<vmem>>, vector<1x192xf32>
    %c0_7 = arith.constant 0 : index
    %c0_8 = arith.constant 0 : index
    %4 = vector.load %arg7[%c0_7, %c0_8] : memref<32x64xf32, #tpu.memory_space<vmem>>, vector<32x64xf32>
    %c0_9 = arith.constant 0 : index
    %c0_10 = arith.constant 0 : index
    %5 = vector.load %arg8[%c0_9, %c0_10] : memref<1x64xf32, #tpu.memory_space<vmem>>, vector<1x64xf32>
    %cst = arith.constant 0xFF800000 : f32
    %6 = vector.broadcast %cst : f32 to vector<16x64xf32>
    %c0_i32 = arith.constant 0 : i32
    %c0_11 = arith.constant 0 : index
    %7 = arith.index_cast %c0_i32 : i32 to index
    %c0_12 = arith.constant 0 : index
    %c0_13 = arith.constant 0 : index
    %8 = vector.load %arg2[%c0_11, %7, %c0_12, %c0_13] : memref<1x4x16x32xf32, #tpu.memory_space<vmem>>, vector<1x1x16x32xf32>
    %9 = vector.shape_cast %8 : vector<1x1x16x32xf32> to vector<16x32xf32>
    %cst_14 = arith.constant dense<0.000000e+00> : vector<16xf32>
    %10 = vector.multi_reduction <add>, %9, %cst_14 [1] : vector<16x32xf32> to vector<16xf32>
    %11 = vector.shape_cast %10 : vector<16xf32> to vector<16x1xf32>
    %cst_15 = arith.constant 3.200000e+01 : f32
    %12 = vector.broadcast %cst_15 : f32 to vector<16x1xf32>
    %13 = arith.divf %11, %12 : vector<16x1xf32>
    %14 = vector.broadcast %13 : vector<16x1xf32> to vector<16x32xf32>
    %15 = arith.subf %9, %14 : vector<16x32xf32>
    %16 = arith.mulf %15, %15 : vector<16x32xf32>
    %cst_16 = arith.constant dense<0.000000e+00> : vector<16xf32>
    %17 = vector.multi_reduction <add>, %16, %cst_16 [1] : vector<16x32xf32> to vector<16xf32>
    %18 = vector.shape_cast %17 : vector<16xf32> to vector<16x1xf32>
    %cst_17 = arith.constant 3.200000e+01 : f32
    %19 = vector.broadcast %cst_17 : f32 to vector<16x1xf32>
    %20 = arith.divf %18, %19 : vector<16x1xf32>
    %cst_18 = arith.constant 9.99999974E-6 : f32
    %21 = vector.broadcast %cst_18 : f32 to vector<16x1xf32>
    %22 = arith.addf %20, %21 : vector<16x1xf32>
    %23 = math.rsqrt %22 : vector<16x1xf32>
    %24 = vector.broadcast %23 : vector<16x1xf32> to vector<16x32xf32>
    %25 = arith.mulf %15, %24 : vector<16x32xf32>
    %26 = vector.broadcast %0 : vector<1x32xf32> to vector<16x32xf32>
    %27 = arith.mulf %25, %26 : vector<16x32xf32>
    %28 = vector.broadcast %1 : vector<1x32xf32> to vector<16x32xf32>
    %29 = arith.addf %27, %28 : vector<16x32xf32>
    %cst_19 = arith.constant dense<0.000000e+00> : vector<16x192xf32>
    %30 = tpu.matmul %29, %2, %cst_19 {dimension_numbers = #tpu.dot_dimension_numbers<[1], [0], [0], [1], [0, 0, 1, 1], [], []>} : vector<16x32xf32>, vector<32x192xf32>, vector<16x192xf32> -> vector<16x192xf32>
    %31 = vector.broadcast %3 : vector<1x192xf32> to vector<16x192xf32>
    %32 = arith.addf %30, %31 : vector<16x192xf32>
    %c0_20 = arith.constant 0 : index
    %33 = arith.index_cast %c0_i32 : i32 to index
    %c0_21 = arith.constant 0 : index
    %c0_22 = arith.constant 0 : index
    %34 = vector.load %arg9[%c0_20, %33, %c0_21, %c0_22] : memref<1x4x16x192xf32, #tpu.memory_space<vmem>>, vector<1x1x16x192xf32>
    %35 = vector.shape_cast %34 : vector<1x1x16x192xf32> to vector<16x192xf32>
    %36 = vector.shape_cast %32 : vector<16x192xf32> to vector<1x1x16x192xf32>
    tpu.vector_store %arg9[%c0_20, %33, %c0_21, %c0_22], %36 {strides = array<i32>} : memref<1x4x16x192xf32, #tpu.memory_space<vmem>>, vector<1x1x16x192xf32>,
    %cst_23 = arith.constant dense<0.000000e+00> : vector<16x64xf32>
    %37 = tpu.matmul %29, %4, %cst_23 {dimension_numbers = #tpu.dot_dimension_numbers<[1], [0], [0], [1], [0, 0, 1, 1], [], []>} : vector<16x32xf32>, vector<32x64xf32>, vector<16x64xf32> -> vector<16x64xf32>
    %38 = vector.broadcast %5 : vector<1x64xf32> to vector<16x64xf32>
    %39 = arith.addf %37, %38 : vector<16x64xf32>
    %40 = arith.maximumf %6, %39 : vector<16x64xf32>
    %c1_i32 = arith.constant 1 : i32
    %c0_24 = arith.constant 0 : index
    %41 = arith.index_cast %c1_i32 : i32 to index
    %c0_25 = arith.constant 0 : index
    %c0_26 = arith.constant 0 : index
    %42 = vector.load %arg2[%c0_24, %41, %c0_25, %c0_26] : memref<1x4x16x32xf32, #tpu.memory_space<vmem>>, vector<1x1x16x32xf32>
    %43 = vector.shape_cast %42 : vector<1x1x16x32xf32> to vector<16x32xf32>
    %cst_27 = arith.constant dense<0.000000e+00> : vector<16xf32>
    %44 = vector.multi_reduction <add>, %43, %cst_27 [1] : vector<16x32xf32> to vector<16xf32>
    %45 = vector.shape_cast %44 : vector<16xf32> to vector<16x1xf32>
    %cst_28 = arith.constant 3.200000e+01 : f32
    %46 = vector.broadcast %cst_28 : f32 to vector<16x1xf32>
    %47 = arith.divf %45, %46 : vector<16x1xf32>
    %48 = vector.broadcast %47 : vector<16x1xf32> to vector<16x32xf32>
    %49 = arith.subf %43, %48 : vector<16x32xf32>
    %50 = arith.mulf %49, %49 : vector<16x32xf32>
    %cst_29 = arith.constant dense<0.000000e+00> : vector<16xf32>
    %51 = vector.multi_reduction <add>, %50, %cst_29 [1] : vector<16x32xf32> to vector<16xf32>
    %52 = vector.shape_cast %51 : vector<16xf32> to vector<16x1xf32>
    %cst_30 = arith.constant 3.200000e+01 : f32
    %53 = vector.broadcast %cst_30 : f32 to vector<16x1xf32>
    %54 = arith.divf %52, %53 : vector<16x1xf32>
    %cst_31 = arith.constant 9.99999974E-6 : f32
    %55 = vector.broadcast %cst_31 : f32 to vector<16x1xf32>
    %56 = arith.addf %54, %55 : vector<16x1xf32>
    %57 = math.rsqrt %56 : vector<16x1xf32>
    %58 = vector.broadcast %57 : vector<16x1xf32> to vector<16x32xf32>
    %59 = arith.mulf %49, %58 : vector<16x32xf32>
    %60 = vector.broadcast %0 : vector<1x32xf32> to vector<16x32xf32>
    %61 = arith.mulf %59, %60 : vector<16x32xf32>
    %62 = vector.broadcast %1 : vector<1x32xf32> to vector<16x32xf32>
    %63 = arith.addf %61, %62 : vector<16x32xf32>
    %cst_32 = arith.constant dense<0.000000e+00> : vector<16x192xf32>
    %64 = tpu.matmul %63, %2, %cst_32 {dimension_numbers = #tpu.dot_dimension_numbers<[1], [0], [0], [1], [0, 0, 1, 1], [], []>} : vector<16x32xf32>, vector<32x192xf32>, vector<16x192xf32> -> vector<16x192xf32>
    %65 = vector.broadcast %3 : vector<1x192xf32> to vector<16x192xf32>
    %66 = arith.addf %64, %65 : vector<16x192xf32>
    %c0_33 = arith.constant 0 : index
    %67 = arith.index_cast %c1_i32 : i32 to index
    %c0_34 = arith.constant 0 : index
    %c0_35 = arith.constant 0 : index
    %68 = vector.load %arg9[%c0_33, %67, %c0_34, %c0_35] : memref<1x4x16x192xf32, #tpu.memory_space<vmem>>, vector<1x1x16x192xf32>
    %69 = vector.shape_cast %68 : vector<1x1x16x192xf32> to vector<16x192xf32>
    %70 = vector.shape_cast %66 : vector<16x192xf32> to vector<1x1x16x192xf32>
    tpu.vector_store %arg9[%c0_33, %67, %c0_34, %c0_35], %70 {strides = array<i32>} : memref<1x4x16x192xf32, #tpu.memory_space<vmem>>, vector<1x1x16x192xf32>,
    %cst_36 = arith.constant dense<0.000000e+00> : vector<16x64xf32>
    %71 = tpu.matmul %63, %4, %cst_36 {dimension_numbers = #tpu.dot_dimension_numbers<[1], [0], [0], [1], [0, 0, 1, 1], [], []>} : vector<16x32xf32>, vector<32x64xf32>, vector<16x64xf32> -> vector<16x64xf32>
    %72 = vector.broadcast %5 : vector<1x64xf32> to vector<16x64xf32>
    %73 = arith.addf %71, %72 : vector<16x64xf32>
    %74 = arith.maximumf %40, %73 : vector<16x64xf32>
    %c2_i32 = arith.constant 2 : i32
    %c0_37 = arith.constant 0 : index
    %75 = arith.index_cast %c2_i32 : i32 to index
    %c0_38 = arith.constant 0 : index
    %c0_39 = arith.constant 0 : index
    %76 = vector.load %arg2[%c0_37, %75, %c0_38, %c0_39] : memref<1x4x16x32xf32, #tpu.memory_space<vmem>>, vector<1x1x16x32xf32>
    %77 = vector.shape_cast %76 : vector<1x1x16x32xf32> to vector<16x32xf32>
    %cst_40 = arith.constant dense<0.000000e+00> : vector<16xf32>
    %78 = vector.multi_reduction <add>, %77, %cst_40 [1] : vector<16x32xf32> to vector<16xf32>
    %79 = vector.shape_cast %78 : vector<16xf32> to vector<16x1xf32>
    %cst_41 = arith.constant 3.200000e+01 : f32
    %80 = vector.broadcast %cst_41 : f32 to vector<16x1xf32>
    %81 = arith.divf %79, %80 : vector<16x1xf32>
    %82 = vector.broadcast %81 : vector<16x1xf32> to vector<16x32xf32>
    %83 = arith.subf %77, %82 : vector<16x32xf32>
    %84 = arith.mulf %83, %83 : vector<16x32xf32>
    %cst_42 = arith.constant dense<0.000000e+00> : vector<16xf32>
    %85 = vector.multi_reduction <add>, %84, %cst_42 [1] : vector<16x32xf32> to vector<16xf32>
    %86 = vector.shape_cast %85 : vector<16xf32> to vector<16x1xf32>
    %cst_43 = arith.constant 3.200000e+01 : f32
    %87 = vector.broadcast %cst_43 : f32 to vector<16x1xf32>
    %88 = arith.divf %86, %87 : vector<16x1xf32>
    %cst_44 = arith.constant 9.99999974E-6 : f32
    %89 = vector.broadcast %cst_44 : f32 to vector<16x1xf32>
    %90 = arith.addf %88, %89 : vector<16x1xf32>
    %91 = math.rsqrt %90 : vector<16x1xf32>
    %92 = vector.broadcast %91 : vector<16x1xf32> to vector<16x32xf32>
    %93 = arith.mulf %83, %92 : vector<16x32xf32>
    %94 = vector.broadcast %0 : vector<1x32xf32> to vector<16x32xf32>
    %95 = arith.mulf %93, %94 : vector<16x32xf32>
    %96 = vector.broadcast %1 : vector<1x32xf32> to vector<16x32xf32>
    %97 = arith.addf %95, %96 : vector<16x32xf32>
    %cst_45 = arith.constant dense<0.000000e+00> : vector<16x192xf32>
    %98 = tpu.matmul %97, %2, %cst_45 {dimension_numbers = #tpu.dot_dimension_numbers<[1], [0], [0], [1], [0, 0, 1, 1], [], []>} : vector<16x32xf32>, vector<32x192xf32>, vector<16x192xf32> -> vector<16x192xf32>
    %99 = vector.broadcast %3 : vector<1x192xf32> to vector<16x192xf32>
    %100 = arith.addf %98, %99 : vector<16x192xf32>
    %c0_46 = arith.constant 0 : index
    %101 = arith.index_cast %c2_i32 : i32 to index
    %c0_47 = arith.constant 0 : index
    %c0_48 = arith.constant 0 : index
    %102 = vector.load %arg9[%c0_46, %101, %c0_47, %c0_48] : memref<1x4x16x192xf32, #tpu.memory_space<vmem>>, vector<1x1x16x192xf32>
    %103 = vector.shape_cast %102 : vector<1x1x16x192xf32> to vector<16x192xf32>
    %104 = vector.shape_cast %100 : vector<16x192xf32> to vector<1x1x16x192xf32>
    tpu.vector_store %arg9[%c0_46, %101, %c0_47, %c0_48], %104 {strides = array<i32>} : memref<1x4x16x192xf32, #tpu.memory_space<vmem>>, vector<1x1x16x192xf32>,
    %cst_49 = arith.constant dense<0.000000e+00> : vector<16x64xf32>
    %105 = tpu.matmul %97, %4, %cst_49 {dimension_numbers = #tpu.dot_dimension_numbers<[1], [0], [0], [1], [0, 0, 1, 1], [], []>} : vector<16x32xf32>, vector<32x64xf32>, vector<16x64xf32> -> vector<16x64xf32>
    %106 = vector.broadcast %5 : vector<1x64xf32> to vector<16x64xf32>
    %107 = arith.addf %105, %106 : vector<16x64xf32>
    %108 = arith.maximumf %74, %107 : vector<16x64xf32>
    %c3_i32 = arith.constant 3 : i32
    %c0_50 = arith.constant 0 : index
    %109 = arith.index_cast %c3_i32 : i32 to index
    %c0_51 = arith.constant 0 : index
    %c0_52 = arith.constant 0 : index
    %110 = vector.load %arg2[%c0_50, %109, %c0_51, %c0_52] : memref<1x4x16x32xf32, #tpu.memory_space<vmem>>, vector<1x1x16x32xf32>
    %111 = vector.shape_cast %110 : vector<1x1x16x32xf32> to vector<16x32xf32>
    %cst_53 = arith.constant dense<0.000000e+00> : vector<16xf32>
    %112 = vector.multi_reduction <add>, %111, %cst_53 [1] : vector<16x32xf32> to vector<16xf32>
    %113 = vector.shape_cast %112 : vector<16xf32> to vector<16x1xf32>
    %cst_54 = arith.constant 3.200000e+01 : f32
    %114 = vector.broadcast %cst_54 : f32 to vector<16x1xf32>
    %115 = arith.divf %113, %114 : vector<16x1xf32>
    %116 = vector.broadcast %115 : vector<16x1xf32> to vector<16x32xf32>
    %117 = arith.subf %111, %116 : vector<16x32xf32>
    %118 = arith.mulf %117, %117 : vector<16x32xf32>
    %cst_55 = arith.constant dense<0.000000e+00> : vector<16xf32>
    %119 = vector.multi_reduction <add>, %118, %cst_55 [1] : vector<16x32xf32> to vector<16xf32>
    %120 = vector.shape_cast %119 : vector<16xf32> to vector<16x1xf32>
    %cst_56 = arith.constant 3.200000e+01 : f32
    %121 = vector.broadcast %cst_56 : f32 to vector<16x1xf32>
    %122 = arith.divf %120, %121 : vector<16x1xf32>
    %cst_57 = arith.constant 9.99999974E-6 : f32
    %123 = vector.broadcast %cst_57 : f32 to vector<16x1xf32>
    %124 = arith.addf %122, %123 : vector<16x1xf32>
    %125 = math.rsqrt %124 : vector<16x1xf32>
    %126 = vector.broadcast %125 : vector<16x1xf32> to vector<16x32xf32>
    %127 = arith.mulf %117, %126 : vector<16x32xf32>
    %128 = vector.broadcast %0 : vector<1x32xf32> to vector<16x32xf32>
    %129 = arith.mulf %127, %128 : vector<16x32xf32>
    %130 = vector.broadcast %1 : vector<1x32xf32> to vector<16x32xf32>
    %131 = arith.addf %129, %130 : vector<16x32xf32>
    %cst_58 = arith.constant dense<0.000000e+00> : vector<16x192xf32>
    %132 = tpu.matmul %131, %2, %cst_58 {dimension_numbers = #tpu.dot_dimension_numbers<[1], [0], [0], [1], [0, 0, 1, 1], [], []>} : vector<16x32xf32>, vector<32x192xf32>, vector<16x192xf32> -> vector<16x192xf32>
    %133 = vector.broadcast %3 : vector<1x192xf32> to vector<16x192xf32>
    %134 = arith.addf %132, %133 : vector<16x192xf32>
    %c0_59 = arith.constant 0 : index
    %135 = arith.index_cast %c3_i32 : i32 to index
    %c0_60 = arith.constant 0 : index
    %c0_61 = arith.constant 0 : index
    %136 = vector.load %arg9[%c0_59, %135, %c0_60, %c0_61] : memref<1x4x16x192xf32, #tpu.memory_space<vmem>>, vector<1x1x16x192xf32>
    %137 = vector.shape_cast %136 : vector<1x1x16x192xf32> to vector<16x192xf32>
    %138 = vector.shape_cast %134 : vector<16x192xf32> to vector<1x1x16x192xf32>
    tpu.vector_store %arg9[%c0_59, %135, %c0_60, %c0_61], %138 {strides = array<i32>} : memref<1x4x16x192xf32, #tpu.memory_space<vmem>>, vector<1x1x16x192xf32>,
    %cst_62 = arith.constant dense<0.000000e+00> : vector<16x64xf32>
    %139 = tpu.matmul %131, %4, %cst_62 {dimension_numbers = #tpu.dot_dimension_numbers<[1], [0], [0], [1], [0, 0, 1, 1], [], []>} : vector<16x32xf32>, vector<32x64xf32>, vector<16x64xf32> -> vector<16x64xf32>
    %140 = vector.broadcast %5 : vector<1x64xf32> to vector<16x64xf32>
    %141 = arith.addf %139, %140 : vector<16x64xf32>
    %142 = arith.maximumf %108, %141 : vector<16x64xf32>
    %c4_i32 = arith.constant 4 : i32
    %c0_63 = arith.constant 0 : index
    %c0_64 = arith.constant 0 : index
    %c0_65 = arith.constant 0 : index
    %143 = vector.load %arg10[%c0_63, %c0_64, %c0_65] : memref<1x16x64xf32, #tpu.memory_space<vmem>>, vector<1x16x64xf32>
    %144 = vector.shape_cast %143 : vector<1x16x64xf32> to vector<16x64xf32>
    %145 = vector.shape_cast %142 : vector<16x64xf32> to vector<1x16x64xf32>
    tpu.vector_store %arg10[%c0_63, %c0_64, %c0_65], %145 {strides = array<i32>} : memref<1x16x64xf32, #tpu.memory_space<vmem>>, vector<1x16x64xf32>,
    return
  }
  func.func @transform_0(%arg0: i32, %arg1: i32) -> (i32, i32, i32, i32) {
    %c0_i32 = arith.constant 0 : i32
    %c0_i32_0 = arith.constant 0 : i32
    %c0_i32_1 = arith.constant 0 : i32
    return %arg0, %c0_i32, %arg1, %c0_i32_0 : i32, i32, i32, i32
  }
  func.func @transform_1(%arg0: i32, %arg1: i32) -> (i32, i32) {
    %c0_i32 = arith.constant 0 : i32
    %c0_i32_0 = arith.constant 0 : i32
    %c0_i32_1 = arith.constant 0 : i32
    return %c0_i32, %c0_i32_0 : i32, i32
  }
  func.func @transform_2(%arg0: i32, %arg1: i32) -> (i32, i32) {
    %c0_i32 = arith.constant 0 : i32
    %c0_i32_0 = arith.constant 0 : i32
    %c0_i32_1 = arith.constant 0 : i32
    return %c0_i32, %c0_i32_0 : i32, i32
  }
  func.func @transform_3(%arg0: i32, %arg1: i32) -> (i32, i32) {
    %c0_i32 = arith.constant 0 : i32
    %c0_i32_0 = arith.constant 0 : i32
    %c0_i32_1 = arith.constant 0 : i32
    return %c0_i32, %c0_i32_0 : i32, i32
  }
  func.func @transform_4(%arg0: i32, %arg1: i32) -> (i32, i32) {
    %c0_i32 = arith.constant 0 : i32
    %c0_i32_0 = arith.constant 0 : i32
    %c0_i32_1 = arith.constant 0 : i32
    return %c0_i32, %c0_i32_0 : i32, i32
  }
  func.func @transform_5(%arg0: i32, %arg1: i32) -> (i32, i32) {
    %c0_i32 = arith.constant 0 : i32
    %c0_i32_0 = arith.constant 0 : i32
    %c0_i32_1 = arith.constant 0 : i32
    return %c0_i32, %c0_i32_0 : i32, i32
  }
  func.func @transform_6(%arg0: i32, %arg1: i32) -> (i32, i32) {
    %c0_i32 = arith.constant 0 : i32
    %c0_i32_0 = arith.constant 0 : i32
    %c0_i32_1 = arith.constant 0 : i32
    return %c0_i32, %c0_i32_0 : i32, i32
  }
  func.func @transform_7(%arg0: i32, %arg1: i32) -> (i32, i32, i32, i32) {
    %c0_i32 = arith.constant 0 : i32
    %c0_i32_0 = arith.constant 0 : i32
    %c0_i32_1 = arith.constant 0 : i32
    return %arg0, %c0_i32, %arg1, %c0_i32_0 : i32, i32, i32, i32
  }
  func.func @transform_8(%arg0: i32, %arg1: i32) -> (i32, i32, i32) {
    %c0_i32 = arith.constant 0 : i32
    %c0_i32_0 = arith.constant 0 : i32
    return %arg0, %arg1, %c0_i32 : i32, i32, i32
  }
}

</mosaic_0001>

<llo_original>
// kernel: tpu_custom_call.1
$region0: #{tpu_custom_call.1}
  #allocation0 [shape = 'u32[]', space=smem, size = 0x4, offset = 0x4, fixed_abs, tag = 'smem constant byte address 0x4 - core index']
  #allocation1 [shape = 'u32[144,128]{1,0:T(1,128)}', space=vmem, size = 0x12000, scoped, tag = 'internal scratch']
  %s0 = inlined_call_operand.hbm [shape: f32[2,4,16,32], index: 0, kind: input, shape index: {}]
  %s1 = inlined_call_operand.vmem [shape: f32[1,32], index: 1, kind: input, shape index: {}]
  %s2 = inlined_call_operand.vmem [shape: f32[1,32], index: 2, kind: input, shape index: {}]
  %s3 = inlined_call_operand.hbm [shape: f32[32,192], index: 3, kind: input, shape index: {}]
  %s4 = inlined_call_operand.vmem [shape: f32[1,192], index: 4, kind: input, shape index: {}]
  %s5 = inlined_call_operand.hbm [shape: f32[32,64], index: 5, kind: input, shape index: {}]
  %s6 = inlined_call_operand.vmem [shape: f32[1,64], index: 6, kind: input, shape index: {}]
  %s7 = inlined_call_operand.hbm [shape: f32[2,4,16,192], index: 7, kind: output, shape index: {0}]
  %s8 = inlined_call_operand.hbm [shape: f32[2,16,64], index: 8, kind: output, shape index: {1}]
  %9 = xla_tuple %s7, %s8
  %s10 = sld [smem:[#allocation0]]
  $region81: #{tpu_custom_call.1} parent=0
    _
  %s12 = ssub.s32 1, %s10
  %s13 = scalar_select 0, %s12, %s10
  $region1: #{tpu_custom_call.1} parent=0
    #allocation2 [shape = 'u8[65536]{0}', space=vmem, size = 0x10000, scoped, tag = 'input window, operand 0']
    #allocation3 [shape = 's32[2]{0}', space=sflag, size = 0x8, scoped, tag = 'scoped memory for tpu_custom_call.1']
    #allocation4 [shape = 's32[2]{0}', space=sflag, size = 0x8, scoped, tag = 'scoped memory for tpu_custom_call.1']
    #allocation5 [shape = 'u8[32768]{0}', space=vmem, size = 0x8000, scoped, tag = 'input window, operand 3, single buffered']
    #allocation6 [shape = 's32[1]{0}', space=sflag, size = 0x4, scoped, tag = 'scoped memory for tpu_custom_call.1']
    #allocation7 [shape = 'u8[16384]{0}', space=vmem, size = 0x4000, scoped, tag = 'input window, operand 5, single buffered']
    #allocation8 [shape = 'u8[131072]{0}', space=vmem, size = 0x20000, scoped, tag = 'output window, operand 0']
    #allocation9 [shape = 'u8[16384]{0}', space=vmem, size = 0x4000, scoped, tag = 'output window, operand 1']
    #allocation10 [shape = 's32[2]{0}', space=sflag, size = 0x8, scoped, tag = 'scoped memory for tpu_custom_call.1']
    %14 = vsyncpa [#allocation3], 0
    %s15 = scalar_lea.sflag [#allocation3], 1
    %16 = vsyncpa %s15, 0
    %17 = vsyncpa [#allocation6], 0
    %18 = vsyncpa [#allocation4], 0
    %s19 = scalar_lea.sflag [#allocation4], 1
    %20 = vsyncpa %s19, 0
    %21 = vsyncpa [#allocation10], 0
    %s22 = scalar_lea.sflag [#allocation10], 1
    %23 = vsyncpa %s22, 0
    loop: start=0, step=1, limit=4
    $region2: #{tpu_custom_call.1} parent=1 // loop_pre_header
      _
    $region3: #{tpu_custom_call.1} parent=1 // loop_header
      %s25 = sphi 0, %s29
      %p26 = scmp.ge.s32.totalorder %s25, 4
      %s32 = sphi 0, %s44
      %s33 = sphi 0, %s40
      %s34 = sphi 0, %s32
      %s35 = sphi 0, %s33
      %s36 = sphi 0, %s34
      %s37 = sphi 0, %s35
      %s49 = sphi 0, %s51
      %s52 = sphi 0, %s49
      %s53 = sphi 0, %s52
      %s69 = sphi 0, %s53
      %s73 = sphi 0, %s73
      %s75 = sphi 0, %s73
      %s76 = sphi 0, %s75
      %s90 = sphi 0, %s76
      %s94 = sphi 0, %s94
      %s96 = sphi 0, %s94
      %s97 = sphi 0, %s96
      %s111 = sphi 0, %s97
      %s115 = sphi 0, %s115
      %s117 = sphi 0, %s115
      %s118 = sphi 0, %s117
      %s132 = sphi 0, %s118
      %s136 = sphi 0, %s136
      %s138 = sphi 0, %s136
      %s139 = sphi 0, %s138
      %s153 = sphi 0, %s139
      %s157 = sphi 0, %s157
      %s159 = sphi 0, %s157
      %s160 = sphi 0, %s159
      %s174 = sphi 0, %s160
      %s178 = sphi 0, %s178
      %s180 = sphi 0, %s178
      %s181 = sphi 0, %s180
      %s195 = sphi 0, %s181
      %s203 = sphi 0, %s205
      %s206 = sphi 0, %s203
      %s207 = sphi 0, %s206
      %s223 = sphi 0, %s207
      %s231 = sphi 0, %s233
      %s234 = sphi 0, %s231
      %s235 = sphi 0, %s234
      %s251 = sphi 0, %s235
    $region4: #{tpu_custom_call.1} parent=1 // loop_header_branch
      %28 = sbr.rel (%p26) target = $region8
    $region5: #{tpu_custom_call.1} parent=1 // loop_body
      %s30 = ssub.s32 %s25, 1
      %s31 = ssub.s32 %s25, 2
      %s38 = sadd.s32 1, %s33
      %p39 = scmp.ge.s32.totalorder %s38, 1
      %s40 = scalar_select %p39, 0, %s38
      %s41 = sadd.s32 1, %s32
      %s42 = scalar_select %p39, %s41, %s32
      %p43 = scmp.ge.s32.totalorder %s42, 2
      %s44 = scalar_select %p43, 0, %s42
      %s45 = ssub.s32 %s32, %s44
      %s46 = ssub.s32 %s33, %s40
      %s47 = sor.u32 %s45, %s46
      %p48 = scmp.eq.s32.totalorder %s47, 0
      %s50 = sadd.s32 %s49, 1
      %s51 = scalar_select %p48, %s49, %s50
      %p54 = pneg %p48
      %p55 = scmp.eq.s32.totalorder %s25, 1
      %p56 = por %p54, %p55
      %p57 = scmp.ne.s32.totalorder %s49, %s52
      %p58 = scmp.eq.s32.totalorder %s25, 0
      %p59 = por %p57, %p58
      %p60 = scmp.ne.s32.totalorder %s49, %s52
      %p61 = scmp.eq.s32.totalorder %s30, 1
      %p62 = por %p60, %p61
      %p63 = scmp.ne.s32.totalorder %s52, %s53
      %p64 = scmp.eq.s32.totalorder %s30, 0
      %p65 = por %p63, %p64
      %p66 = scmp.ne.s32.totalorder %s52, %s53
      %p67 = scmp.eq.s32.totalorder %s31, 1
      %p68 = por %p66, %p67
      %p70 = scmp.ne.s32.totalorder %s53, %s69
      %p71 = scmp.eq.s32.totalorder %s31, 0
      %p72 = por %p70, %p71
      %s74 = sadd.s32 %s73, 1
      %p77 = scmp.eq.s32.totalorder %s25, 1
      %p78 = scmp.ne.s32.totalorder %s73, %s75
      %p79 = scmp.eq.s32.totalorder %s25, 0
      %p80 = por %p78, %p79
      %p81 = scmp.ne.s32.totalorder %s73, %s75
      %p82 = scmp.eq.s32.totalorder %s30, 1
      %p83 = por %p81, %p82
      %p84 = scmp.ne.s32.totalorder %s75, %s76
      %p85 = scmp.eq.s32.totalorder %s30, 0
      %p86 = por %p84, %p85
      %p87 = scmp.ne.s32.totalorder %s75, %s76
      %p88 = scmp.eq.s32.totalorder %s31, 1
      %p89 = por %p87, %p88
      %p91 = scmp.ne.s32.totalorder %s76, %s90
      %p92 = scmp.eq.s32.totalorder %s31, 0
      %p93 = por %p91, %p92
      %s95 = sadd.s32 %s94, 1
      %p98 = scmp.eq.s32.totalorder %s25, 1
      %p99 = scmp.ne.s32.totalorder %s94, %s96
      %p100 = scmp.eq.s32.totalorder %s25, 0
      %p101 = por %p99, %p100
      %p102 = scmp.ne.s32.totalorder %s94, %s96
      %p103 = scmp.eq.s32.totalorder %s30, 1
      %p104 = por %p102, %p103
      %p105 = scmp.ne.s32.totalorder %s96, %s97
      %p106 = scmp.eq.s32.totalorder %s30, 0
      %p107 = por %p105, %p106
      %p108 = scmp.ne.s32.totalorder %s96, %s97
      %p109 = scmp.eq.s32.totalorder %s31, 1
      %p110 = por %p108, %p109
      %p112 = scmp.ne.s32.totalorder %s97, %s111
      %p113 = scmp.eq.s32.totalorder %s31, 0
      %p114 = por %p112, %p113
      %s116 = sadd.s32 %s115, 1
      %p119 = scmp.eq.s32.totalorder %s25, 1
      %p120 = scmp.ne.s32.totalorder %s115, %s117
      %p121 = scmp.eq.s32.totalorder %s25, 0
      %p122 = por %p120, %p121
      %p123 = scmp.ne.s32.totalorder %s115, %s117
      %p124 = scmp.eq.s32.totalorder %s30, 1
      %p125 = por %p123, %p124
      %p126 = scmp.ne.s32.totalorder %s117, %s118
      %p127 = scmp.eq.s32.totalorder %s30, 0
      %p128 = por %p126, %p127
      %p129 = scmp.ne.s32.totalorder %s117, %s118
      %p130 = scmp.eq.s32.totalorder %s31, 1
      %p131 = por %p129, %p130
      %p133 = scmp.ne.s32.totalorder %s118, %s132
      %p134 = scmp.eq.s32.totalorder %s31, 0
      %p135 = por %p133, %p134
      %s137 = sadd.s32 %s136, 1
      %p140 = scmp.eq.s32.totalorder %s25, 1
      %p141 = scmp.ne.s32.totalorder %s136, %s138
      %p142 = scmp.eq.s32.totalorder %s25, 0
      %p143 = por %p141, %p142
      %p144 = scmp.ne.s32.totalorder %s136, %s138
      %p145 = scmp.eq.s32.totalorder %s30, 1
      %p146 = por %p144, %p145
      %p147 = scmp.ne.s32.totalorder %s138, %s139
      %p148 = scmp.eq.s32.totalorder %s30, 0
      %p149 = por %p147, %p148
      %p150 = scmp.ne.s32.totalorder %s138, %s139
      %p151 = scmp.eq.s32.totalorder %s31, 1
      %p152 = por %p150, %p151
      %p154 = scmp.ne.s32.totalorder %s139, %s153
      %p155 = scmp.eq.s32.totalorder %s31, 0
      %p156 = por %p154, %p155
      %s158 = sadd.s32 %s157, 1
      %p161 = scmp.eq.s32.totalorder %s25, 1
      %p162 = scmp.ne.s32.totalorder %s157, %s159
      %p163 = scmp.eq.s32.totalorder %s25, 0
      %p164 = por %p162, %p163
      %p165 = scmp.ne.s32.totalorder %s157, %s159
      %p166 = scmp.eq.s32.totalorder %s30, 1
      %p167 = por %p165, %p166
      %p168 = scmp.ne.s32.totalorder %s159, %s160
      %p169 = scmp.eq.s32.totalorder %s30, 0
      %p170 = por %p168, %p169
      %p171 = scmp.ne.s32.totalorder %s159, %s160
      %p172 = scmp.eq.s32.totalorder %s31, 1
      %p173 = por %p171, %p172
      %p175 = scmp.ne.s32.totalorder %s160, %s174
      %p176 = scmp.eq.s32.totalorder %s31, 0
      %p177 = por %p175, %p176
      %s179 = sadd.s32 %s178, 1
      %p182 = scmp.eq.s32.totalorder %s25, 1
      %p183 = scmp.ne.s32.totalorder %s178, %s180
      %p184 = scmp.eq.s32.totalorder %s25, 0
      %p185 = por %p183, %p184
      %p186 = scmp.ne.s32.totalorder %s178, %s180
      %p187 = scmp.eq.s32.totalorder %s30, 1
      %p188 = por %p186, %p187
      %p189 = scmp.ne.s32.totalorder %s180, %s181
      %p190 = scmp.eq.s32.totalorder %s30, 0
      %p191 = por %p189, %p190
      %p192 = scmp.ne.s32.totalorder %s180, %s181
      %p193 = scmp.eq.s32.totalorder %s31, 1
      %p194 = por %p192, %p193
      %p196 = scmp.ne.s32.totalorder %s181, %s195
      %p197 = scmp.eq.s32.totalorder %s31, 0
      %p198 = por %p196, %p197
      %s199 = ssub.s32 %s32, %s44
      %s200 = ssub.s32 %s33, %s40
      %s201 = sor.u32 %s199, %s200
      %p202 = scmp.eq.s32.totalorder %s201, 0
      %s204 = sadd.s32 %s203, 1
      %s205 = scalar_select %p202, %s203, %s204
      %p208 = pneg %p202
      %p209 = scmp.eq.s32.totalorder %s25, 1
      %p210 = por %p208, %p209
      %p211 = scmp.ne.s32.totalorder %s203, %s206
      %p212 = scmp.eq.s32.totalorder %s25, 0
      %p213 = por %p211, %p212
      %p214 = scmp.ne.s32.totalorder %s203, %s206
      %p215 = scmp.eq.s32.totalorder %s30, 1
      %p216 = por %p214, %p215
      %p217 = scmp.ne.s32.totalorder %s206, %s207
      %p218 = scmp.eq.s32.totalorder %s30, 0
      %p219 = por %p217, %p218
      %p220 = scmp.ne.s32.totalorder %s206, %s207
      %p221 = scmp.eq.s32.totalorder %s31, 1
      %p222 = por %p220, %p221
      %p224 = scmp.ne.s32.totalorder %s207, %s223
      %p225 = scmp.eq.s32.totalorder %s31, 0
      %p226 = por %p224, %p225
      %s227 = ssub.s32 %s32, %s44
      %s228 = ssub.s32 %s33, %s40
      %s229 = sor.u32 %s227, %s228
      %p230 = scmp.eq.s32.totalorder %s229, 0
      %s232 = sadd.s32 %s231, 1
      %s233 = scalar_select %p230, %s231, %s232
      %p236 = pneg %p230
      %p237 = scmp.eq.s32.totalorder %s25, 1
      %p238 = por %p236, %p237
      %p239 = scmp.ne.s32.totalorder %s231, %s234
      %p240 = scmp.eq.s32.totalorder %s25, 0
      %p241 = por %p239, %p240
      %p242 = scmp.ne.s32.totalorder %s231, %s234
      %p243 = scmp.eq.s32.totalorder %s30, 1
      %p244 = por %p242, %p243
      %p245 = scmp.ne.s32.totalorder %s234, %s235
      %p246 = scmp.eq.s32.totalorder %s30, 0
      %p247 = por %p245, %p246
      %p248 = scmp.ne.s32.totalorder %s234, %s235
      %p249 = scmp.eq.s32.totalorder %s31, 1
      %p250 = por %p248, %p249
      %p252 = scmp.ne.s32.totalorder %s235, %s251
      %p253 = scmp.eq.s32.totalorder %s31, 0
      %p254 = por %p252, %p253
      %p255 = scmp.le.s32.totalorder 1, %s25
      %p256 = scmp.lt.s32.totalorder %s25, 3
      %p257 = pnand %p255, %p256
      %p258 = pneg %p257
      // Predicated region
      $region9: #{tpu_custom_call.1} parent=5 // pred_check
        _
      $region10: #{tpu_custom_call.1} parent=5 // pred_check_branch
        %260 = sbr.rel (%p257) target = $region12
      $region11: #{tpu_custom_call.1} parent=5 // pred_region
        %s261 = ssub.s32 %s25, 1
        // Predicated region
        $region13: #{tpu_custom_call.1} parent=11 // pred_check
          %p262 = pneg %p86
        $region14: #{tpu_custom_call.1} parent=11 // pred_check_branch
          %264 = sbr.rel (%p262) target = $region16
        $region15: #{tpu_custom_call.1} parent=11 // pred_region
          _
        $region16: #{tpu_custom_call.1} parent=11 // pred_fallthru
          _
        // Predicated region
        $region17: #{tpu_custom_call.1} parent=11 // pred_check
          %p265 = pneg %p107
        $region18: #{tpu_custom_call.1} parent=11 // pred_check_branch
          %267 = sbr.rel (%p265) target = $region20
        $region19: #{tpu_custom_call.1} parent=11 // pred_region
          _
        $region20: #{tpu_custom_call.1} parent=11 // pred_fallthru
          _
        // Predicated region
        $region21: #{tpu_custom_call.1} parent=11 // pred_check
          %p268 = pneg %p128
        $region22: #{tpu_custom_call.1} parent=11 // pred_check_branch
          %270 = sbr.rel (%p268) target = $region24
        $region23: #{tpu_custom_call.1} parent=11 // pred_region
          %s272 = ssub.s32 1024, 1024
          %273 = vsyncadd [#allocation6], %s272
          %s274 = sshll.u32 [#allocation5], 4
          %s275 = int_to_ptr.vmem [resolvable:$true] %s274
          %280 = dma.hbm_to_vmem [thread:$0]  %s3, 1024, %s275, [#allocation6], 256, 256, 16
        $region24: #{tpu_custom_call.1} parent=11 // pred_fallthru
          _
        // Predicated region
        $region25: #{tpu_custom_call.1} parent=11 // pred_check
          %p281 = pneg %p149
        $region26: #{tpu_custom_call.1} parent=11 // pred_check_branch
          %283 = sbr.rel (%p281) target = $region28
        $region27: #{tpu_custom_call.1} parent=11 // pred_region
          _
        $region28: #{tpu_custom_call.1} parent=11 // pred_fallthru
          _
        // Predicated region
        $region29: #{tpu_custom_call.1} parent=11 // pred_check
          %p284 = pneg %p170
        $region30: #{tpu_custom_call.1} parent=11 // pred_check_branch
          %286 = sbr.rel (%p284) target = $region32
        $region31: #{tpu_custom_call.1} parent=11 // pred_region
          %s288 = ssub.s32 512, 512
          %289 = vsyncadd [#allocation6], %s288
          %s290 = sshll.u32 [#allocation7], 4
          %s291 = int_to_ptr.vmem [resolvable:$true] %s290
          %296 = dma.hbm_to_vmem [thread:$0]  %s5, 512, %s291, [#allocation6], 128, 128, 8
        $region32: #{tpu_custom_call.1} parent=11 // pred_fallthru
          _
        // Predicated region
        $region33: #{tpu_custom_call.1} parent=11 // pred_check
          %p297 = pneg %p191
        $region34: #{tpu_custom_call.1} parent=11 // pred_check_branch
          %299 = sbr.rel (%p297) target = $region36
        $region35: #{tpu_custom_call.1} parent=11 // pred_region
          _
        $region36: #{tpu_custom_call.1} parent=11 // pred_fallthru
          _
      $region12: #{tpu_custom_call.1} parent=5 // pred_fallthru
        _
      %p300 = scmp.lt.s32.totalorder %s25, 2
      // Predicated region
      $region37: #{tpu_custom_call.1} parent=5 // pred_check
        %p301 = pneg %p300
      $region38: #{tpu_custom_call.1} parent=5 // pred_check_branch
        %303 = sbr.rel (%p301) target = $region40
      $region39: #{tpu_custom_call.1} parent=5 // pred_region
        // Predicated region
        $region41: #{tpu_custom_call.1} parent=39 // pred_check
          %p304 = pneg %p59
        $region42: #{tpu_custom_call.1} parent=39 // pred_check_branch
          %306 = sbr.rel (%p304) target = $region44
        $region43: #{tpu_custom_call.1} parent=39 // pred_region
          %s307 = sand.u32 %s49, 1
          %s308 = scalar_lea.sflag [#allocation3], %s307
          %s309 = sand.u32 %s49, 1
          %s310 = smul.addr %s309, 64
          %s311 = scalar_lea.vmem [#allocation2], %s310
          %s312 = smul.u32 2, %s33
          %s314 = ssub.s32 1024, 1024
          %315 = vsyncadd %s308, %s314
          %s316 = smul.addr %s32, 8
          %s317 = sadd.s32 %s312, %s316
          %s318 = smul.addr %s317, 128
          %s319 = scalar_lea.hbm %s0, %s318
          %s320 = sshll.u32 %s311, 4
          %s321 = int_to_ptr.vmem [resolvable:$true] %s320
          %326 = dma.hbm_to_vmem [thread:$0]  %s319, 1024, %s321, %s308, 128, 128, 8
        $region44: #{tpu_custom_call.1} parent=39 // pred_fallthru
          _
      $region40: #{tpu_custom_call.1} parent=5 // pred_fallthru
        _
      %p327 = scmp.le.s32.totalorder 1, %s25
      %p328 = scmp.lt.s32.totalorder %s25, 3
      %p329 = pnand %p327, %p328
      %p330 = pneg %p329
      // Predicated region
      $region45: #{tpu_custom_call.1} parent=5 // pred_check
        _
      $region46: #{tpu_custom_call.1} parent=5 // pred_check_branch
        %332 = sbr.rel (%p329) target = $region48
      $region47: #{tpu_custom_call.1} parent=5 // pred_region
        %s333 = ssub.s32 %s25, 1
        %s334 = sand.u32 %s52, 1
        %s335 = scalar_lea.sflag [#allocation3], %s334
        %s336 = sand.u32 %s52, 1
        %s337 = smul.addr %s336, 64
        %s338 = scalar_lea.vmem [#allocation2], %s337
        // Predicated region
        $region49: #{tpu_custom_call.1} parent=47 // pred_check
          %p339 = pneg %p65
        $region50: #{tpu_custom_call.1} parent=47 // pred_check_branch
          %341 = sbr.rel (%p339) target = $region52
        $region51: #{tpu_custom_call.1} parent=47 // pred_region
          %342 = dma.done %s335, 1024
        $region52: #{tpu_custom_call.1} parent=47 // pred_fallthru
          _
        // Predicated region
        $region53: #{tpu_custom_call.1} parent=47 // pred_check
          %p343 = pneg %p128
        $region54: #{tpu_custom_call.1} parent=47 // pred_check_branch
          %345 = sbr.rel (%p343) target = $region56
        $region55: #{tpu_custom_call.1} parent=47 // pred_region
          %346 = dma.done [#allocation6], 1024
        $region56: #{tpu_custom_call.1} parent=47 // pred_fallthru
          _
        // Predicated region
        $region57: #{tpu_custom_call.1} parent=47 // pred_check
          %p347 = pneg %p170
        $region58: #{tpu_custom_call.1} parent=47 // pred_check_branch
          %349 = sbr.rel (%p347) target = $region60
        $region59: #{tpu_custom_call.1} parent=47 // pred_region
          %350 = dma.done [#allocation6], 512
        $region60: #{tpu_custom_call.1} parent=47 // pred_fallthru
          _
        %s351 = sand.u32 %s52, 1
        %s352 = scalar_lea.sflag [#allocation3], %s351
        %s353 = sand.u32 %s52, 1
        %s354 = smul.addr %s353, 64
        %s355 = scalar_lea.vmem [#allocation2], %s354
        %p356 = pneg %p65
        %p357 = pneg %p62
        %p358 = pneg %p86
        %p359 = pneg %p83
        %p360 = pneg %p107
        %p361 = pneg %p104
        %p362 = pneg %p128
        %p363 = pneg %p125
        %p364 = pneg %p149
        %p365 = pneg %p146
        %p366 = pneg %p170
        %p367 = pneg %p167
        %p368 = pneg %p191
        %p369 = pneg %p188
        %p370 = pneg %p219
        %p371 = pneg %p216
        %s372 = sand.u32 %s206, 1
        %s373 = scalar_lea.sflag [#allocation4], %s372
        %s374 = sand.u32 %s206, 1
        %s375 = smul.addr %s374, 128
        %s376 = scalar_lea.vmem [#allocation8], %s375
        %p377 = pneg %p247
        %p378 = pneg %p244
        %s379 = sand.u32 %s234, 1
        %s380 = scalar_lea.sflag [#allocation10], %s379
        %s381 = sand.u32 %s234, 1
        %s382 = smul.addr %s381, 16
        %s383 = scalar_lea.vmem [#allocation9], %s382
        %s384 = smul.u32 2, %s35
        %s385 = smul.u32 2, %s35
        %s386 = smul.u32 2, %s35
        %v387 = vld [vmem:[%s1] sm:$0x1]
        %v388 = vld [vmem:[%s2] sm:$0x1]
        %v389 = vld [vmem:[#allocation5] sm:$0xff]
        %v390 = vld [vmem:[#allocation5 + $0x8] sm:$0xff]
        %v391 = vld [vmem:[#allocation5 + $0x10] sm:$0xff]
        %v392 = vld [vmem:[#allocation5 + $0x18] sm:$0xff]
        %v393 = vld [vmem:[#allocation5 + $0x20] sm:$0xff]
        %v394 = vld [vmem:[#allocation5 + $0x28] sm:$0xff]
        %v395 = vld [vmem:[#allocation5 + $0x30] sm:$0xff]
        %v396 = vld [vmem:[#allocation5 + $0x38] sm:$0xff]
        %v397 = vld [vmem:[%s4] sm:$0x3]
        %v398 = vld [vmem:[#allocation7] sm:$0xff]
        %v399 = vld [vmem:[#allocation7 + $0x8] sm:$0xff]
        %v400 = vld [vmem:[#allocation7 + $0x10] sm:$0xff]
        %v401 = vld [vmem:[#allocation7 + $0x18] sm:$0xff]
        %v402 = vld [vmem:[%s6] sm:$0x1]
        %v403 = vld [vmem:[%s338] sm:$0xff]
        %v404 = vld [vmem:[%s338 + $0x8] sm:$0xff]
        %vm405 = vcmask 261120
        %v406 = vsel %vm405, %v403, 0.0
        %407 = vadd.xlane.f32.xlu0 %v406
        %v408 = vpop.xlane.xlu0 %407
        %v409 = vsel %vm405, %v404, 0.0
        %410 = vadd.xlane.f32.xlu0 %v409
        %v411 = vpop.xlane.xlu0 %410
        %v412 = vrcp.pop 32.0
        %v413 = vmul.f32 %v408, %v412
        %v414 = vmul.f32 %v411, %v412
        %v415 = vsub.f32 %v403, %v413
        %v416 = vsub.f32 %v404, %v414
        %v417 = vmul.f32 %v415, %v415
        %v418 = vmul.f32 %v416, %v416
        %v419 = vsel %vm405, %v417, 0.0
        %420 = vadd.xlane.f32.xlu0 %v419
        %v421 = vpop.xlane.xlu0 %420
        %v422 = vsel %vm405, %v418, 0.0
        %423 = vadd.xlane.f32.xlu0 %v422
        %v424 = vpop.xlane.xlu0 %423
        %v425 = vmul.f32 %v421, %v412
        %v426 = vmul.f32 %v424, %v412
        %v427 = vadd.f32 %v425, 1e-05
        %v428 = vadd.f32 %v426, 1e-05
        %v429 = vrsqrt.pop %v427
        %v430 = vrsqrt.pop %v428
        %v431 = vmul.f32 %v415, %v429
        %v432 = vmul.f32 %v416, %v430
        %v434 = vlaneseq
        %v435 = vshrl.u32 %v434, 7
        %v436 = vsub.s32 0, %v435
        %v437 = vrot.slane %v387, %v436
        %v439 = vmul.f32 %v431, %v437
        %v440 = vmul.f32 %v432, %v437
        %v442 = vlaneseq
        %v443 = vshrl.u32 %v442, 7
        %v444 = vsub.s32 0, %v443
        %v445 = vrot.slane %v388, %v444
        %v447 = vadd.f32 %v439, %v445
        %v448 = vadd.f32 %v440, %v445
        %v450 = vlaneseq
        %v451 = vshrl.u32 %v450, 7
        %v452 = vsub.s32 0, %v451
        %v453 = vrot.slane %v397, %v452
        %v454 = vlaneseq
        %v455 = vshrl.u32 %v454, 7
        %v456 = vsub.s32 1, %v455
        %v457 = vrot.slane %v397, %v456
        %v461 = vsel %vm405, %v447, 0
        %v464 = vsel %vm405, %v448, 0
        %466 = vmatprep.subr.mxu0 %v390
        %467 = vmatpush1.msra.mxu0 %v389
        %468 = vmatprep.subr.mxu0 %v392
        %469 = vmatpush1.msra.mxu0 %v391
        %470 = vmatprep.subr.mxu0 %v394
        %471 = vmatpush1.msra.mxu0 %v393
        %472 = vmatprep.subr.mxu0 %v396
        %473 = vmatpush1.msra.mxu0 %v395
        %474 = vmatprep.subr.mxu0 0.0
        %475 = vmatpush1.msra.mxu0 0.0
        %476 = vmatprep.subr.mxu0 0.0
        %477 = vmatpush1.msra.mxu0 0.0
        %478 = vmatprep.subr.mxu0 0.0
        %479 = vmatpush1.msra.mxu0 0.0
        %480 = vmatprep.subr.mxu0 0.0
        %481 = vmatpush1.msra.mxu0 0.0
        %482 = vmatprep.subr.mxu0 0.0
        %483 = vmatpush1.msra.mxu0 0.0
        %484 = vmatprep.subr.mxu0 0.0
        %485 = vmatpush1.msra.mxu0 0.0
        %486 = vmatprep.subr.mxu0 0.0
        %487 = vmatpush1.msra.mxu0 0.0
        %488 = vmatprep.subr.mxu0 0.0
        %489 = vmatpush1.msra.mxu0 0.0
        %490 = vmatprep.subr.mxu0 0.0
        %491 = vmatpush1.msra.mxu0 0.0
        %492 = vmatprep.subr.mxu0 0.0
        %493 = vmatpush1.msra.mxu0 0.0
        %494 = vmatprep.subr.mxu0 0.0
        %495 = vmatpush1.msra.mxu0 0.0
        %496 = vmatprep.subr.mxu0 0.0
        %497 = vmatpush1.msra.mxu0 0.0
        %498 = vmatprep.subr.mxu0 0.0
        %499 = vmatpush1.msra.mxu0 0.0
        %500 = vmatprep.subr.mxu0 0.0
        %501 = vmatpush1.msra.mxu0 0.0
        %502 = vmatprep.subr.mxu0 0.0
        %503 = vmatpush1.msra.mxu0 0.0
        %504 = vmatprep.subr.mxu0 0.0
        %505 = vmatpush1.msra.mxu0 0.0
        %506 = vmatprep.subr.mxu0 0.0
        %507 = vmatpush1.msra.mxu0 0.0
        %508 = vmatprep.subr.mxu0 0.0
        %509 = vmatpush1.msra.mxu0 0.0
        %510 = vmatprep.subr.mxu0 0.0
        %511 = vmatpush1.msra.mxu0 0.0
        %512 = vmatprep.subr.mxu0 0.0
        %513 = vmatpush1.msra.mxu0 0.0
        %514 = vmatprep.subr.mxu0 0.0
        %515 = vmatpush1.msra.mxu0 0.0
        %516 = vmatprep.subr.mxu0 0.0
        %517 = vmatpush1.msra.mxu0 0.0
        %518 = vmatprep.subr.mxu0 0.0
        %519 = vmatpush1.msra.mxu0 0.0
        %520 = vmatprep.subr.mxu0 0.0
        %521 = vmatpush1.msra.mxu0 0.0
        %522 = vmatprep.subr.mxu0 0.0
        %523 = vmatpush1.msra.mxu0 0.0
        %524 = vmatprep.subr.mxu0 0.0
        %525 = vmatpush1.msra.mxu0 0.0
        %526 = vmatprep.subr.mxu0 0.0
        %527 = vmatpush1.msra.mxu0 0.0
        %528 = vmatprep.subr.mxu0 0.0
        %529 = vmatpush1.msra.mxu0 0.0
        %530 = vmatprep.mubr.f32.mxu0 0.0
        %531 = vmatmul.mubr.f32.gmra.mrb[0].mxu0 %v461
        %v532 = vpop.f32.mrb[0].mxu0
        %v533 = vadd.f32 %v453, %v532
        %v534 = vpop.f32.mrb[0].mxu0
        %v535 = vadd.f32 %v457, %v534
        %536 = vmatprep.mubr.f32.mxu0 0.0
        %537 = vmatmul.mubr.f32.gmra.mrb[0].mxu0 %v464
        %v538 = vpop.f32.mrb[0].mxu0
        %v539 = vadd.f32 %v453, %v538
        %v540 = vpop.f32.mrb[0].mxu0
        %v541 = vadd.f32 %v457, %v540
        %542 = vdwg.mxu0
        %543 = vst [vmem:[%s376] sm:$0xff] %v533
        %vm544 = vcmask 523264
        %545 = vst.msk [vmem:[%s376 + $0x8] sm:$0xff] %vm544, %v535
        %546 = vst [vmem:[%s376 + $0x10] sm:$0xff] %v539
        %547 = vst.msk [vmem:[%s376 + $0x18] sm:$0xff] %vm544, %v541
        %v549 = vlaneseq
        %v550 = vshrl.u32 %v549, 7
        %v551 = vsub.s32 0, %v550
        %v552 = vrot.slane %v402, %v551
        %554 = vmatprep.subr.mxu0 0.0
        %555 = vmatpush1.msra.mxu0 %v398
        %556 = vmatprep.subr.mxu0 0.0
        %557 = vmatpush1.msra.mxu0 %v399
        %558 = vmatprep.subr.mxu0 0.0
        %559 = vmatpush1.msra.mxu0 %v400
        %560 = vmatprep.subr.mxu0 0.0
        %561 = vmatpush1.msra.mxu0 %v401
        %562 = vmatprep.subr.mxu0 0.0
        %563 = vmatpush1.msra.mxu0 0.0
        %564 = vmatprep.subr.mxu0 0.0
        %565 = vmatpush1.msra.mxu0 0.0
        %566 = vmatprep.subr.mxu0 0.0
        %567 = vmatpush1.msra.mxu0 0.0
        %568 = vmatprep.subr.mxu0 0.0
        %569 = vmatpush1.msra.mxu0 0.0
        %570 = vmatprep.subr.mxu0 0.0
        %571 = vmatpush1.msra.mxu0 0.0
        %572 = vmatprep.subr.mxu0 0.0
        %573 = vmatpush1.msra.mxu0 0.0
        %574 = vmatprep.subr.mxu0 0.0
        %575 = vmatpush1.msra.mxu0 0.0
        %576 = vmatprep.subr.mxu0 0.0
        %577 = vmatpush1.msra.mxu0 0.0
        %578 = vmatprep.subr.mxu0 0.0
        %579 = vmatpush1.msra.mxu0 0.0
        %580 = vmatprep.subr.mxu0 0.0
        %581 = vmatpush1.msra.mxu0 0.0
        %582 = vmatprep.subr.mxu0 0.0
        %583 = vmatpush1.msra.mxu0 0.0
        %584 = vmatprep.subr.mxu0 0.0
        %585 = vmatpush1.msra.mxu0 0.0
        %586 = vmatprep.subr.mxu0 0.0
        %587 = vmatpush1.msra.mxu0 0.0
        %588 = vmatprep.subr.mxu0 0.0
        %589 = vmatpush1.msra.mxu0 0.0
        %590 = vmatprep.subr.mxu0 0.0
        %591 = vmatpush1.msra.mxu0 0.0
        %592 = vmatprep.subr.mxu0 0.0
        %593 = vmatpush1.msra.mxu0 0.0
        %594 = vmatprep.subr.mxu0 0.0
        %595 = vmatpush1.msra.mxu0 0.0
        %596 = vmatprep.subr.mxu0 0.0
        %597 = vmatpush1.msra.mxu0 0.0
        %598 = vmatprep.subr.mxu0 0.0
        %599 = vmatpush1.msra.mxu0 0.0
        %600 = vmatprep.subr.mxu0 0.0
        %601 = vmatpush1.msra.mxu0 0.0
        %602 = vmatprep.subr.mxu0 0.0
        %603 = vmatpush1.msra.mxu0 0.0
        %604 = vmatprep.subr.mxu0 0.0
        %605 = vmatpush1.msra.mxu0 0.0
        %606 = vmatprep.subr.mxu0 0.0
        %607 = vmatpush1.msra.mxu0 0.0
        %608 = vmatprep.subr.mxu0 0.0
        %609 = vmatpush1.msra.mxu0 0.0
        %610 = vmatprep.subr.mxu0 0.0
        %611 = vmatpush1.msra.mxu0 0.0
        %612 = vmatprep.subr.mxu0 0.0
        %613 = vmatpush1.msra.mxu0 0.0
        %614 = vmatprep.subr.mxu0 0.0
        %615 = vmatpush1.msra.mxu0 0.0
        %616 = vmatprep.subr.mxu0 0.0
        %617 = vmatpush1.msra.mxu0 0.0
        %618 = vmatprep.mubr.f32.mxu0 0.0
        %619 = vmatmul.mubr.f32.gmra.mrb[0].mxu0 %v461
        %v620 = vpop.f32.mrb[0].mxu0
        %v621 = vadd.f32 %v552, %v620
        %v622 = vpop.f32.mrb[0].mxu0
        %623 = vmatprep.mubr.f32.mxu0 0.0
        %624 = vmatmul.mubr.f32.gmra.mrb[0].mxu0 %v464
        %v625 = vpop.f32.mrb[0].mxu0
        %v626 = vadd.f32 %v552, %v625
        %v627 = vpop.f32.mrb[0].mxu0
        %628 = vdwg.mxu0
        %s629 = scalar_lea.vmem %s338, 16 [#allocation2]
        %v630 = vld [vmem:[%s629] sm:$0xff]
        %v631 = vld [vmem:[%s629 + $0x8] sm:$0xff]
        %v632 = vsel %vm405, %v630, 0.0
        %633 = vadd.xlane.f32.xlu0 %v632
        %v634 = vpop.xlane.xlu0 %633
        %v635 = vsel %vm405, %v631, 0.0
        %636 = vadd.xlane.f32.xlu0 %v635
        %v637 = vpop.xlane.xlu0 %636
        %v638 = vmul.f32 %v634, %v412
        %v639 = vmul.f32 %v637, %v412
        %v640 = vsub.f32 %v630, %v638
        %v641 = vsub.f32 %v631, %v639
        %v642 = vmul.f32 %v640, %v640
        %v643 = vmul.f32 %v641, %v641
        %v644 = vsel %vm405, %v642, 0.0
        %645 = vadd.xlane.f32.xlu0 %v644
        %v646 = vpop.xlane.xlu0 %645
        %v647 = vsel %vm405, %v643, 0.0
        %648 = vadd.xlane.f32.xlu0 %v647
        %v649 = vpop.xlane.xlu0 %648
        %v650 = vmul.f32 %v646, %v412
        %v651 = vmul.f32 %v649, %v412
        %v652 = vadd.f32 %v650, 1e-05
        %v653 = vadd.f32 %v651, 1e-05
        %v654 = vrsqrt.pop %v652
        %v655 = vrsqrt.pop %v653
        %v656 = vmul.f32 %v640, %v654
        %v657 = vmul.f32 %v641, %v655
        %v658 = vmul.f32 %v656, %v437
        %v659 = vmul.f32 %v657, %v437
        %v660 = vadd.f32 %v658, %v445
        %v661 = vadd.f32 %v659, %v445
        %v663 = vsel %vm405, %v660, 0
        %v666 = vsel %vm405, %v661, 0
        %668 = vmatprep.subr.mxu0 %v390
        %669 = vmatpush1.msra.mxu0 %v389
        %670 = vmatprep.subr.mxu0 %v392
        %671 = vmatpush1.msra.mxu0 %v391
        %672 = vmatprep.subr.mxu0 %v394
        %673 = vmatpush1.msra.mxu0 %v393
        %674 = vmatprep.subr.mxu0 %v396
        %675 = vmatpush1.msra.mxu0 %v395
        %676 = vmatprep.subr.mxu0 0.0
        %677 = vmatpush1.msra.mxu0 0.0
        %678 = vmatprep.subr.mxu0 0.0
        %679 = vmatpush1.msra.mxu0 0.0
        %680 = vmatprep.subr.mxu0 0.0
        %681 = vmatpush1.msra.mxu0 0.0
        %682 = vmatprep.subr.mxu0 0.0
        %683 = vmatpush1.msra.mxu0 0.0
        %684 = vmatprep.subr.mxu0 0.0
        %685 = vmatpush1.msra.mxu0 0.0
        %686 = vmatprep.subr.mxu0 0.0
        %687 = vmatpush1.msra.mxu0 0.0
        %688 = vmatprep.subr.mxu0 0.0
        %689 = vmatpush1.msra.mxu0 0.0
        %690 = vmatprep.subr.mxu0 0.0
        %691 = vmatpush1.msra.mxu0 0.0
        %692 = vmatprep.subr.mxu0 0.0
        %693 = vmatpush1.msra.mxu0 0.0
        %694 = vmatprep.subr.mxu0 0.0
        %695 = vmatpush1.msra.mxu0 0.0
        %696 = vmatprep.subr.mxu0 0.0
        %697 = vmatpush1.msra.mxu0 0.0
        %698 = vmatprep.subr.mxu0 0.0
        %699 = vmatpush1.msra.mxu0 0.0
        %700 = vmatprep.subr.mxu0 0.0
        %701 = vmatpush1.msra.mxu0 0.0
        %702 = vmatprep.subr.mxu0 0.0
        %703 = vmatpush1.msra.mxu0 0.0
        %704 = vmatprep.subr.mxu0 0.0
        %705 = vmatpush1.msra.mxu0 0.0
        %706 = vmatprep.subr.mxu0 0.0
        %707 = vmatpush1.msra.mxu0 0.0
        %708 = vmatprep.subr.mxu0 0.0
        %709 = vmatpush1.msra.mxu0 0.0
        %710 = vmatprep.subr.mxu0 0.0
        %711 = vmatpush1.msra.mxu0 0.0
        %712 = vmatprep.subr.mxu0 0.0
        %713 = vmatpush1.msra.mxu0 0.0
        %714 = vmatprep.subr.mxu0 0.0
        %715 = vmatpush1.msra.mxu0 0.0
        %716 = vmatprep.subr.mxu0 0.0
        %717 = vmatpush1.msra.mxu0 0.0
        %718 = vmatprep.subr.mxu0 0.0
        %719 = vmatpush1.msra.mxu0 0.0
        %720 = vmatprep.subr.mxu0 0.0
        %721 = vmatpush1.msra.mxu0 0.0
        %722 = vmatprep.subr.mxu0 0.0
        %723 = vmatpush1.msra.mxu0 0.0
        %724 = vmatprep.subr.mxu0 0.0
        %725 = vmatpush1.msra.mxu0 0.0
        %726 = vmatprep.subr.mxu0 0.0
        %727 = vmatpush1.msra.mxu0 0.0
        %728 = vmatprep.subr.mxu0 0.0
        %729 = vmatpush1.msra.mxu0 0.0
        %730 = vmatprep.subr.mxu0 0.0
        %731 = vmatpush1.msra.mxu0 0.0
        %732 = vmatprep.mubr.f32.mxu0 0.0
        %733 = vmatmul.mubr.f32.gmra.mrb[0].mxu0 %v663
        %v734 = vpop.f32.mrb[0].mxu0
        %v735 = vadd.f32 %v453, %v734
        %v736 = vpop.f32.mrb[0].mxu0
        %v737 = vadd.f32 %v457, %v736
        %738 = vmatprep.mubr.f32.mxu0 0.0
        %739 = vmatmul.mubr.f32.gmra.mrb[0].mxu0 %v666
        %v740 = vpop.f32.mrb[0].mxu0
        %v741 = vadd.f32 %v453, %v740
        %v742 = vpop.f32.mrb[0].mxu0
        %v743 = vadd.f32 %v457, %v742
        %744 = vdwg.mxu0
        %s745 = scalar_lea.vmem %s376, 32 [#allocation8]
        %746 = vst [vmem:[%s745] sm:$0xff] %v735
        %747 = vst.msk [vmem:[%s745 + $0x8] sm:$0xff] %vm544, %v737
        %748 = vst [vmem:[%s745 + $0x10] sm:$0xff] %v741
        %749 = vst.msk [vmem:[%s745 + $0x18] sm:$0xff] %vm544, %v743
        %750 = vmatprep.subr.mxu0 0.0
        %751 = vmatpush1.msra.mxu0 %v398
        %752 = vmatprep.subr.mxu0 0.0
        %753 = vmatpush1.msra.mxu0 %v399
        %754 = vmatprep.subr.mxu0 0.0
        %755 = vmatpush1.msra.mxu0 %v400
        %756 = vmatprep.subr.mxu0 0.0
        %757 = vmatpush1.msra.mxu0 %v401
        %758 = vmatprep.subr.mxu0 0.0
        %759 = vmatpush1.msra.mxu0 0.0
        %760 = vmatprep.subr.mxu0 0.0
        %761 = vmatpush1.msra.mxu0 0.0
        %762 = vmatprep.subr.mxu0 0.0
        %763 = vmatpush1.msra.mxu0 0.0
        %764 = vmatprep.subr.mxu0 0.0
        %765 = vmatpush1.msra.mxu0 0.0
        %766 = vmatprep.subr.mxu0 0.0
        %767 = vmatpush1.msra.mxu0 0.0
        %768 = vmatprep.subr.mxu0 0.0
        %769 = vmatpush1.msra.mxu0 0.0
        %770 = vmatprep.subr.mxu0 0.0
        %771 = vmatpush1.msra.mxu0 0.0
        %772 = vmatprep.subr.mxu0 0.0
        %773 = vmatpush1.msra.mxu0 0.0
        %774 = vmatprep.subr.mxu0 0.0
        %775 = vmatpush1.msra.mxu0 0.0
        %776 = vmatprep.subr.mxu0 0.0
        %777 = vmatpush1.msra.mxu0 0.0
        %778 = vmatprep.subr.mxu0 0.0
        %779 = vmatpush1.msra.mxu0 0.0
        %780 = vmatprep.subr.mxu0 0.0
        %781 = vmatpush1.msra.mxu0 0.0
        %782 = vmatprep.subr.mxu0 0.0
        %783 = vmatpush1.msra.mxu0 0.0
        %784 = vmatprep.subr.mxu0 0.0
        %785 = vmatpush1.msra.mxu0 0.0
        %786 = vmatprep.subr.mxu0 0.0
        %787 = vmatpush1.msra.mxu0 0.0
        %788 = vmatprep.subr.mxu0 0.0
        %789 = vmatpush1.msra.mxu0 0.0
        %790 = vmatprep.subr.mxu0 0.0
        %791 = vmatpush1.msra.mxu0 0.0
        %792 = vmatprep.subr.mxu0 0.0
        %793 = vmatpush1.msra.mxu0 0.0
        %794 = vmatprep.subr.mxu0 0.0
        %795 = vmatpush1.msra.mxu0 0.0
        %796 = vmatprep.subr.mxu0 0.0
        %797 = vmatpush1.msra.mxu0 0.0
        %798 = vmatprep.subr.mxu0 0.0
        %799 = vmatpush1.msra.mxu0 0.0
        %800 = vmatprep.subr.mxu0 0.0
        %801 = vmatpush1.msra.mxu0 0.0
        %802 = vmatprep.subr.mxu0 0.0
        %803 = vmatpush1.msra.mxu0 0.0
        %804 = vmatprep.subr.mxu0 0.0
        %805 = vmatpush1.msra.mxu0 0.0
        %806 = vmatprep.subr.mxu0 0.0
        %807 = vmatpush1.msra.mxu0 0.0
        %808 = vmatprep.subr.mxu0 0.0
        %809 = vmatpush1.msra.mxu0 0.0
        %810 = vmatprep.subr.mxu0 0.0
        %811 = vmatpush1.msra.mxu0 0.0
        %812 = vmatprep.subr.mxu0 0.0
        %813 = vmatpush1.msra.mxu0 0.0
        %814 = vmatprep.mubr.f32.mxu0 0.0
        %815 = vmatmul.mubr.f32.gmra.mrb[0].mxu0 %v663
        %v816 = vpop.f32.mrb[0].mxu0
        %v817 = vadd.f32 %v552, %v816
        %v818 = vpop.f32.mrb[0].mxu0
        %819 = vmatprep.mubr.f32.mxu0 0.0
        %820 = vmatmul.mubr.f32.gmra.mrb[0].mxu0 %v666
        %v821 = vpop.f32.mrb[0].mxu0
        %v822 = vadd.f32 %v552, %v821
        %v823 = vpop.f32.mrb[0].mxu0
        %824 = vdwg.mxu0
        %v825 = vmax.f32 %v621, %v817
        %v826 = vmax.f32 %v626, %v822
        %s827 = scalar_lea.vmem %s338, 32 [#allocation2]
        %v828 = vld [vmem:[%s827] sm:$0xff]
        %v829 = vld [vmem:[%s827 + $0x8] sm:$0xff]
        %v830 = vsel %vm405, %v828, 0.0
        %831 = vadd.xlane.f32.xlu0 %v830
        %v832 = vpop.xlane.xlu0 %831
        %v833 = vsel %vm405, %v829, 0.0
        %834 = vadd.xlane.f32.xlu0 %v833
        %v835 = vpop.xlane.xlu0 %834
        %v836 = vmul.f32 %v832, %v412
        %v837 = vmul.f32 %v835, %v412
        %v838 = vsub.f32 %v828, %v836
        %v839 = vsub.f32 %v829, %v837
        %v840 = vmul.f32 %v838, %v838
        %v841 = vmul.f32 %v839, %v839
        %v842 = vsel %vm405, %v840, 0.0
        %843 = vadd.xlane.f32.xlu0 %v842
        %v844 = vpop.xlane.xlu0 %843
        %v845 = vsel %vm405, %v841, 0.0
        %846 = vadd.xlane.f32.xlu0 %v845
        %v847 = vpop.xlane.xlu0 %846
        %v848 = vmul.f32 %v844, %v412
        %v849 = vmul.f32 %v847, %v412
        %v850 = vadd.f32 %v848, 1e-05
        %v851 = vadd.f32 %v849, 1e-05
        %v852 = vrsqrt.pop %v850
        %v853 = vrsqrt.pop %v851
        %v854 = vmul.f32 %v838, %v852
        %v855 = vmul.f32 %v839, %v853
        %v856 = vmul.f32 %v854, %v437
        %v857 = vmul.f32 %v855, %v437
        %v858 = vadd.f32 %v856, %v445
        %v859 = vadd.f32 %v857, %v445
        %v861 = vsel %vm405, %v858, 0
        %v864 = vsel %vm405, %v859, 0
        %866 = vmatprep.subr.mxu0 %v390
        %867 = vmatpush1.msra.mxu0 %v389
        %868 = vmatprep.subr.mxu0 %v392
        %869 = vmatpush1.msra.mxu0 %v391
        %870 = vmatprep.subr.mxu0 %v394
        %871 = vmatpush1.msra.mxu0 %v393
        %872 = vmatprep.subr.mxu0 %v396
        %873 = vmatpush1.msra.mxu0 %v395
        %874 = vmatprep.subr.mxu0 0.0
        %875 = vmatpush1.msra.mxu0 0.0
        %876 = vmatprep.subr.mxu0 0.0
        %877 = vmatpush1.msra.mxu0 0.0
        %878 = vmatprep.subr.mxu0 0.0
        %879 = vmatpush1.msra.mxu0 0.0
        %880 = vmatprep.subr.mxu0 0.0
        %881 = vmatpush1.msra.mxu0 0.0
        %882 = vmatprep.subr.mxu0 0.0
        %883 = vmatpush1.msra.mxu0 0.0
        %884 = vmatprep.subr.mxu0 0.0
        %885 = vmatpush1.msra.mxu0 0.0
        %886 = vmatprep.subr.mxu0 0.0
        %887 = vmatpush1.msra.mxu0 0.0
        %888 = vmatprep.subr.mxu0 0.0
        %889 = vmatpush1.msra.mxu0 0.0
        %890 = vmatprep.subr.mxu0 0.0
        %891 = vmatpush1.msra.mxu0 0.0
        %892 = vmatprep.subr.mxu0 0.0
        %893 = vmatpush1.msra.mxu0 0.0
        %894 = vmatprep.subr.mxu0 0.0
        %895 = vmatpush1.msra.mxu0 0.0
        %896 = vmatprep.subr.mxu0 0.0
        %897 = vmatpush1.msra.mxu0 0.0
        %898 = vmatprep.subr.mxu0 0.0
        %899 = vmatpush1.msra.mxu0 0.0
        %900 = vmatprep.subr.mxu0 0.0
        %901 = vmatpush1.msra.mxu0 0.0
        %902 = vmatprep.subr.mxu0 0.0
        %903 = vmatpush1.msra.mxu0 0.0
        %904 = vmatprep.subr.mxu0 0.0
        %905 = vmatpush1.msra.mxu0 0.0
        %906 = vmatprep.subr.mxu0 0.0
        %907 = vmatpush1.msra.mxu0 0.0
        %908 = vmatprep.subr.mxu0 0.0
        %909 = vmatpush1.msra.mxu0 0.0
        %910 = vmatprep.subr.mxu0 0.0
        %911 = vmatpush1.msra.mxu0 0.0
        %912 = vmatprep.subr.mxu0 0.0
        %913 = vmatpush1.msra.mxu0 0.0
        %914 = vmatprep.subr.mxu0 0.0
        %915 = vmatpush1.msra.mxu0 0.0
        %916 = vmatprep.subr.mxu0 0.0
        %917 = vmatpush1.msra.mxu0 0.0
        %918 = vmatprep.subr.mxu0 0.0
        %919 = vmatpush1.msra.mxu0 0.0
        %920 = vmatprep.subr.mxu0 0.0
        %921 = vmatpush1.msra.mxu0 0.0
        %922 = vmatprep.subr.mxu0 0.0
        %923 = vmatpush1.msra.mxu0 0.0
        %924 = vmatprep.subr.mxu0 0.0
        %925 = vmatpush1.msra.mxu0 0.0
        %926 = vmatprep.subr.mxu0 0.0
        %927 = vmatpush1.msra.mxu0 0.0
        %928 = vmatprep.subr.mxu0 0.0
        %929 = vmatpush1.msra.mxu0 0.0
        %930 = vmatprep.mubr.f32.mxu0 0.0
        %931 = vmatmul.mubr.f32.gmra.mrb[0].mxu0 %v861
        %v932 = vpop.f32.mrb[0].mxu0
        %v933 = vadd.f32 %v453, %v932
        %v934 = vpop.f32.mrb[0].mxu0
        %v935 = vadd.f32 %v457, %v934
        %936 = vmatprep.mubr.f32.mxu0 0.0
        %937 = vmatmul.mubr.f32.gmra.mrb[0].mxu0 %v864
        %v938 = vpop.f32.mrb[0].mxu0
        %v939 = vadd.f32 %v453, %v938
        %v940 = vpop.f32.mrb[0].mxu0
        %v941 = vadd.f32 %v457, %v940
        %942 = vdwg.mxu0
        %s943 = scalar_lea.vmem %s376, 64 [#allocation8]
        %944 = vst [vmem:[%s943] sm:$0xff] %v933
        %945 = vst.msk [vmem:[%s943 + $0x8] sm:$0xff] %vm544, %v935
        %946 = vst [vmem:[%s943 + $0x10] sm:$0xff] %v939
        %947 = vst.msk [vmem:[%s943 + $0x18] sm:$0xff] %vm544, %v941
        %948 = vmatprep.subr.mxu0 0.0
        %949 = vmatpush1.msra.mxu0 %v398
        %950 = vmatprep.subr.mxu0 0.0
        %951 = vmatpush1.msra.mxu0 %v399
        %952 = vmatprep.subr.mxu0 0.0
        %953 = vmatpush1.msra.mxu0 %v400
        %954 = vmatprep.subr.mxu0 0.0
        %955 = vmatpush1.msra.mxu0 %v401
        %956 = vmatprep.subr.mxu0 0.0
        %957 = vmatpush1.msra.mxu0 0.0
        %958 = vmatprep.subr.mxu0 0.0
        %959 = vmatpush1.msra.mxu0 0.0
        %960 = vmatprep.subr.mxu0 0.0
        %961 = vmatpush1.msra.mxu0 0.0
        %962 = vmatprep.subr.mxu0 0.0
        %963 = vmatpush1.msra.mxu0 0.0
        %964 = vmatprep.subr.mxu0 0.0
        %965 = vmatpush1.msra.mxu0 0.0
        %966 = vmatprep.subr.mxu0 0.0
        %967 = vmatpush1.msra.mxu0 0.0
        %968 = vmatprep.subr.mxu0 0.0
        %969 = vmatpush1.msra.mxu0 0.0
        %970 = vmatprep.subr.mxu0 0.0
        %971 = vmatpush1.msra.mxu0 0.0
        %972 = vmatprep.subr.mxu0 0.0
        %973 = vmatpush1.msra.mxu0 0.0
        %974 = vmatprep.subr.mxu0 0.0
        %975 = vmatpush1.msra.mxu0 0.0
        %976 = vmatprep.subr.mxu0 0.0
        %977 = vmatpush1.msra.mxu0 0.0
        %978 = vmatprep.subr.mxu0 0.0
        %979 = vmatpush1.msra.mxu0 0.0
        %980 = vmatprep.subr.mxu0 0.0
        %981 = vmatpush1.msra.mxu0 0.0
        %982 = vmatprep.subr.mxu0 0.0
        %983 = vmatpush1.msra.mxu0 0.0
        %984 = vmatprep.subr.mxu0 0.0
        %985 = vmatpush1.msra.mxu0 0.0
        %986 = vmatprep.subr.mxu0 0.0
        %987 = vmatpush1.msra.mxu0 0.0
        %988 = vmatprep.subr.mxu0 0.0
        %989 = vmatpush1.msra.mxu0 0.0
        %990 = vmatprep.subr.mxu0 0.0
        %991 = vmatpush1.msra.mxu0 0.0
        %992 = vmatprep.subr.mxu0 0.0
        %993 = vmatpush1.msra.mxu0 0.0
        %994 = vmatprep.subr.mxu0 0.0
        %995 = vmatpush1.msra.mxu0 0.0
        %996 = vmatprep.subr.mxu0 0.0
        %997 = vmatpush1.msra.mxu0 0.0
        %998 = vmatprep.subr.mxu0 0.0
        %999 = vmatpush1.msra.mxu0 0.0
        %1000 = vmatprep.subr.mxu0 0.0
        %1001 = vmatpush1.msra.mxu0 0.0
        %1002 = vmatprep.subr.mxu0 0.0
        %1003 = vmatpush1.msra.mxu0 0.0
        %1004 = vmatprep.subr.mxu0 0.0
        %1005 = vmatpush1.msra.mxu0 0.0
        %1006 = vmatprep.subr.mxu0 0.0
        %1007 = vmatpush1.msra.mxu0 0.0
        %1008 = vmatprep.subr.mxu0 0.0
        %1009 = vmatpush1.msra.mxu0 0.0
        %1010 = vmatprep.subr.mxu0 0.0
        %1011 = vmatpush1.msra.mxu0 0.0
        %1012 = vmatprep.mubr.f32.mxu0 0.0
        %1013 = vmatmul.mubr.f32.gmra.mrb[0].mxu0 %v861
        %v1014 = vpop.f32.mrb[0].mxu0
        %v1015 = vadd.f32 %v552, %v1014
        %v1016 = vpop.f32.mrb[0].mxu0
        %1017 = vmatprep.mubr.f32.mxu0 0.0
        %1018 = vmatmul.mubr.f32.gmra.mrb[0].mxu0 %v864
        %v1019 = vpop.f32.mrb[0].mxu0
        %v1020 = vadd.f32 %v552, %v1019
        %v1021 = vpop.f32.mrb[0].mxu0
        %1022 = vdwg.mxu0
        %v1023 = vmax.f32 %v825, %v1015
        %v1024 = vmax.f32 %v826, %v1020
        %s1025 = scalar_lea.vmem %s338, 48 [#allocation2]
        %v1026 = vld [vmem:[%s1025] sm:$0xff]
        %v1027 = vld [vmem:[%s1025 + $0x8] sm:$0xff]
        %v1028 = vsel %vm405, %v1026, 0.0
        %1029 = vadd.xlane.f32.xlu0 %v1028
        %v1030 = vpop.xlane.xlu0 %1029
        %v1031 = vsel %vm405, %v1027, 0.0
        %1032 = vadd.xlane.f32.xlu0 %v1031
        %v1033 = vpop.xlane.xlu0 %1032
        %v1034 = vmul.f32 %v1030, %v412
        %v1035 = vmul.f32 %v1033, %v412
        %v1036 = vsub.f32 %v1026, %v1034
        %v1037 = vsub.f32 %v1027, %v1035
        %v1038 = vmul.f32 %v1036, %v1036
        %v1039 = vmul.f32 %v1037, %v1037
        %v1040 = vsel %vm405, %v1038, 0.0
        %1041 = vadd.xlane.f32.xlu0 %v1040
        %v1042 = vpop.xlane.xlu0 %1041
        %v1043 = vsel %vm405, %v1039, 0.0
        %1044 = vadd.xlane.f32.xlu0 %v1043
        %v1045 = vpop.xlane.xlu0 %1044
        %v1046 = vmul.f32 %v1042, %v412
        %v1047 = vmul.f32 %v1045, %v412
        %v1048 = vadd.f32 %v1046, 1e-05
        %v1049 = vadd.f32 %v1047, 1e-05
        %v1050 = vrsqrt.pop %v1048
        %v1051 = vrsqrt.pop %v1049
        %v1052 = vmul.f32 %v1036, %v1050
        %v1053 = vmul.f32 %v1037, %v1051
        %v1054 = vmul.f32 %v1052, %v437
        %v1055 = vmul.f32 %v1053, %v437
        %v1056 = vadd.f32 %v1054, %v445
        %v1057 = vadd.f32 %v1055, %v445
        %v1059 = vsel %vm405, %v1056, 0
        %v1062 = vsel %vm405, %v1057, 0
        %1064 = vmatprep.subr.mxu0 %v390
        %1065 = vmatpush1.msra.mxu0 %v389
        %1066 = vmatprep.subr.mxu0 %v392
        %1067 = vmatpush1.msra.mxu0 %v391
        %1068 = vmatprep.subr.mxu0 %v394
        %1069 = vmatpush1.msra.mxu0 %v393
        %1070 = vmatprep.subr.mxu0 %v396
        %1071 = vmatpush1.msra.mxu0 %v395
        %1072 = vmatprep.subr.mxu0 0.0
        %1073 = vmatpush1.msra.mxu0 0.0
        %1074 = vmatprep.subr.mxu0 0.0
        %1075 = vmatpush1.msra.mxu0 0.0
        %1076 = vmatprep.subr.mxu0 0.0
        %1077 = vmatpush1.msra.mxu0 0.0
        %1078 = vmatprep.subr.mxu0 0.0
        %1079 = vmatpush1.msra.mxu0 0.0
        %1080 = vmatprep.subr.mxu0 0.0
        %1081 = vmatpush1.msra.mxu0 0.0
        %1082 = vmatprep.subr.mxu0 0.0
        %1083 = vmatpush1.msra.mxu0 0.0
        %1084 = vmatprep.subr.mxu0 0.0
        %1085 = vmatpush1.msra.mxu0 0.0
        %1086 = vmatprep.subr.mxu0 0.0
        %1087 = vmatpush1.msra.mxu0 0.0
        %1088 = vmatprep.subr.mxu0 0.0
        %1089 = vmatpush1.msra.mxu0 0.0
        %1090 = vmatprep.subr.mxu0 0.0
        %1091 = vmatpush1.msra.mxu0 0.0
        %1092 = vmatprep.subr.mxu0 0.0
        %1093 = vmatpush1.msra.mxu0 0.0
        %1094 = vmatprep.subr.mxu0 0.0
        %1095 = vmatpush1.msra.mxu0 0.0
        %1096 = vmatprep.subr.mxu0 0.0
        %1097 = vmatpush1.msra.mxu0 0.0
        %1098 = vmatprep.subr.mxu0 0.0
        %1099 = vmatpush1.msra.mxu0 0.0
        %1100 = vmatprep.subr.mxu0 0.0
        %1101 = vmatpush1.msra.mxu0 0.0
        %1102 = vmatprep.subr.mxu0 0.0
        %1103 = vmatpush1.msra.mxu0 0.0
        %1104 = vmatprep.subr.mxu0 0.0
        %1105 = vmatpush1.msra.mxu0 0.0
        %1106 = vmatprep.subr.mxu0 0.0
        %1107 = vmatpush1.msra.mxu0 0.0
        %1108 = vmatprep.subr.mxu0 0.0
        %1109 = vmatpush1.msra.mxu0 0.0
        %1110 = vmatprep.subr.mxu0 0.0
        %1111 = vmatpush1.msra.mxu0 0.0
        %1112 = vmatprep.subr.mxu0 0.0
        %1113 = vmatpush1.msra.mxu0 0.0
        %1114 = vmatprep.subr.mxu0 0.0
        %1115 = vmatpush1.msra.mxu0 0.0
        %1116 = vmatprep.subr.mxu0 0.0
        %1117 = vmatpush1.msra.mxu0 0.0
        %1118 = vmatprep.subr.mxu0 0.0
        %1119 = vmatpush1.msra.mxu0 0.0
        %1120 = vmatprep.subr.mxu0 0.0
        %1121 = vmatpush1.msra.mxu0 0.0
        %1122 = vmatprep.subr.mxu0 0.0
        %1123 = vmatpush1.msra.mxu0 0.0
        %1124 = vmatprep.subr.mxu0 0.0
        %1125 = vmatpush1.msra.mxu0 0.0
        %1126 = vmatprep.subr.mxu0 0.0
        %1127 = vmatpush1.msra.mxu0 0.0
        %1128 = vmatprep.mubr.f32.mxu0 0.0
        %1129 = vmatmul.mubr.f32.gmra.mrb[0].mxu0 %v1059
        %v1130 = vpop.f32.mrb[0].mxu0
        %v1131 = vadd.f32 %v453, %v1130
        %v1132 = vpop.f32.mrb[0].mxu0
        %v1133 = vadd.f32 %v457, %v1132
        %1134 = vmatprep.mubr.f32.mxu0 0.0
        %1135 = vmatmul.mubr.f32.gmra.mrb[0].mxu0 %v1062
        %v1136 = vpop.f32.mrb[0].mxu0
        %v1137 = vadd.f32 %v453, %v1136
        %v1138 = vpop.f32.mrb[0].mxu0
        %v1139 = vadd.f32 %v457, %v1138
        %1140 = vdwg.mxu0
        %s1141 = scalar_lea.vmem %s376, 96 [#allocation8]
        %1142 = vst [vmem:[%s1141] sm:$0xff] %v1131
        %1143 = vst.msk [vmem:[%s1141 + $0x8] sm:$0xff] %vm544, %v1133
        %1144 = vst [vmem:[%s1141 + $0x10] sm:$0xff] %v1137
        %1145 = vst.msk [vmem:[%s1141 + $0x18] sm:$0xff] %vm544, %v1139
        %1146 = vmatprep.subr.mxu0 0.0
        %1147 = vmatpush1.msra.mxu0 %v398
        %1148 = vmatprep.subr.mxu0 0.0
        %1149 = vmatpush1.msra.mxu0 %v399
        %1150 = vmatprep.subr.mxu0 0.0
        %1151 = vmatpush1.msra.mxu0 %v400
        %1152 = vmatprep.subr.mxu0 0.0
        %1153 = vmatpush1.msra.mxu0 %v401
        %1154 = vmatprep.subr.mxu0 0.0
        %1155 = vmatpush1.msra.mxu0 0.0
        %1156 = vmatprep.subr.mxu0 0.0
        %1157 = vmatpush1.msra.mxu0 0.0
        %1158 = vmatprep.subr.mxu0 0.0
        %1159 = vmatpush1.msra.mxu0 0.0
        %1160 = vmatprep.subr.mxu0 0.0
        %1161 = vmatpush1.msra.mxu0 0.0
        %1162 = vmatprep.subr.mxu0 0.0
        %1163 = vmatpush1.msra.mxu0 0.0
        %1164 = vmatprep.subr.mxu0 0.0
        %1165 = vmatpush1.msra.mxu0 0.0
        %1166 = vmatprep.subr.mxu0 0.0
        %1167 = vmatpush1.msra.mxu0 0.0
        %1168 = vmatprep.subr.mxu0 0.0
        %1169 = vmatpush1.msra.mxu0 0.0
        %1170 = vmatprep.subr.mxu0 0.0
        %1171 = vmatpush1.msra.mxu0 0.0
        %1172 = vmatprep.subr.mxu0 0.0
        %1173 = vmatpush1.msra.mxu0 0.0
        %1174 = vmatprep.subr.mxu0 0.0
        %1175 = vmatpush1.msra.mxu0 0.0
        %1176 = vmatprep.subr.mxu0 0.0
        %1177 = vmatpush1.msra.mxu0 0.0
        %1178 = vmatprep.subr.mxu0 0.0
        %1179 = vmatpush1.msra.mxu0 0.0
        %1180 = vmatprep.subr.mxu0 0.0
        %1181 = vmatpush1.msra.mxu0 0.0
        %1182 = vmatprep.subr.mxu0 0.0
        %1183 = vmatpush1.msra.mxu0 0.0
        %1184 = vmatprep.subr.mxu0 0.0
        %1185 = vmatpush1.msra.mxu0 0.0
        %1186 = vmatprep.subr.mxu0 0.0
        %1187 = vmatpush1.msra.mxu0 0.0
        %1188 = vmatprep.subr.mxu0 0.0
        %1189 = vmatpush1.msra.mxu0 0.0
        %1190 = vmatprep.subr.mxu0 0.0
        %1191 = vmatpush1.msra.mxu0 0.0
        %1192 = vmatprep.subr.mxu0 0.0
        %1193 = vmatpush1.msra.mxu0 0.0
        %1194 = vmatprep.subr.mxu0 0.0
        %1195 = vmatpush1.msra.mxu0 0.0
        %1196 = vmatprep.subr.mxu0 0.0
        %1197 = vmatpush1.msra.mxu0 0.0
        %1198 = vmatprep.subr.mxu0 0.0
        %1199 = vmatpush1.msra.mxu0 0.0
        %1200 = vmatprep.subr.mxu0 0.0
        %1201 = vmatpush1.msra.mxu0 0.0
        %1202 = vmatprep.subr.mxu0 0.0
        %1203 = vmatpush1.msra.mxu0 0.0
        %1204 = vmatprep.subr.mxu0 0.0
        %1205 = vmatpush1.msra.mxu0 0.0
        %1206 = vmatprep.subr.mxu0 0.0
        %1207 = vmatpush1.msra.mxu0 0.0
        %1208 = vmatprep.subr.mxu0 0.0
        %1209 = vmatpush1.msra.mxu0 0.0
        %1210 = vmatprep.mubr.f32.mxu0 0.0
        %1211 = vmatmul.mubr.f32.gmra.mrb[0].mxu0 %v1059
        %v1212 = vpop.f32.mrb[0].mxu0
        %v1213 = vadd.f32 %v552, %v1212
        %v1214 = vpop.f32.mrb[0].mxu0
        %1215 = vmatprep.mubr.f32.mxu0 0.0
        %1216 = vmatmul.mubr.f32.gmra.mrb[0].mxu0 %v1062
        %v1217 = vpop.f32.mrb[0].mxu0
        %v1218 = vadd.f32 %v552, %v1217
        %v1219 = vpop.f32.mrb[0].mxu0
        %1220 = vdwg.mxu0
        %v1221 = vmax.f32 %v1023, %v1213
        %v1222 = vmax.f32 %v1024, %v1218
        %1223 = vst.msk [vmem:[%s383] sm:$0xff] %vm544, %v1221
        %1224 = vst.msk [vmem:[%s383 + $0x8] sm:$0xff] %vm544, %v1222
        %s1225 = sand.u32 %s206, 1
        %s1226 = scalar_lea.sflag [#allocation4], %s1225
        %s1227 = sand.u32 %s206, 1
        %s1228 = smul.addr %s1227, 128
        %s1229 = scalar_lea.vmem [#allocation8], %s1228
        %s1230 = sand.u32 %s234, 1
        %s1231 = scalar_lea.sflag [#allocation10], %s1230
        %s1232 = sand.u32 %s234, 1
        %s1233 = smul.addr %s1232, 16
        %s1234 = scalar_lea.vmem [#allocation9], %s1233
        // Predicated region
        $region61: #{tpu_custom_call.1} parent=47 // pred_check
          %p1235 = pneg %p216
        $region62: #{tpu_custom_call.1} parent=47 // pred_check_branch
          %1237 = sbr.rel (%p1235) target = $region64
        $region63: #{tpu_custom_call.1} parent=47 // pred_region
          %s1238 = smul.u32 2, %s35
          %s1240 = ssub.s32 2048, 2048
          %1241 = vsyncadd %s1226, %s1240
          %s1242 = smul.addr %s1238, 2
          %s1243 = smul.addr %s34, 16
          %s1244 = sadd.s32 %s1242, %s1243
          %s1245 = smul.addr %s1244, 128
          %s1246 = scalar_lea.hbm %s7, %s1245
          %s1247 = sshll.u32 %s1229, 4
          %s1248 = int_to_ptr.vmem [resolvable:$true] %s1247
          %1253 = dma.vmem_to_hbm [thread:$0]  %s1248, 2048, %s1246, %s1226, 256, 256, 16
        $region64: #{tpu_custom_call.1} parent=47 // pred_fallthru
          _
        // Predicated region
        $region65: #{tpu_custom_call.1} parent=47 // pred_check
          %p1254 = pneg %p244
        $region66: #{tpu_custom_call.1} parent=47 // pred_check_branch
          %1256 = sbr.rel (%p1254) target = $region68
        $region67: #{tpu_custom_call.1} parent=47 // pred_region
          %s1257 = smul.u32 2, %s35
          %s1259 = ssub.s32 256, 256
          %1260 = vsyncadd %s1231, %s1259
          %s1261 = smul.addr %s34, 2
          %s1262 = sadd.s32 %s1257, %s1261
          %s1263 = smul.addr %s1262, 128
          %s1264 = scalar_lea.hbm %s8, %s1263
          %s1265 = sshll.u32 %s1234, 4
          %s1266 = int_to_ptr.vmem [resolvable:$true] %s1265
          %1271 = dma.vmem_to_hbm [thread:$0]  %s1266, 256, %s1264, %s1231, 128, 128, 8
        $region68: #{tpu_custom_call.1} parent=47 // pred_fallthru
          _
      $region48: #{tpu_custom_call.1} parent=5 // pred_fallthru
        _
      %p1272 = scmp.le.s32.totalorder 2, %s25
      // Predicated region
      $region69: #{tpu_custom_call.1} parent=5 // pred_check
        %p1273 = pneg %p1272
      $region70: #{tpu_custom_call.1} parent=5 // pred_check_branch
        %1275 = sbr.rel (%p1273) target = $region72
      $region71: #{tpu_custom_call.1} parent=5 // pred_region
        %s1276 = ssub.s32 %s25, 2
        // Predicated region
        $region73: #{tpu_custom_call.1} parent=71 // pred_check
          %p1277 = pneg %p222
        $region74: #{tpu_custom_call.1} parent=71 // pred_check_branch
          %1279 = sbr.rel (%p1277) target = $region76
        $region75: #{tpu_custom_call.1} parent=71 // pred_region
          %s1280 = sand.u32 %s207, 1
          %s1281 = scalar_lea.sflag [#allocation4], %s1280
          %s1282 = sand.u32 %s207, 1
          %s1283 = smul.addr %s1282, 128
          %s1284 = scalar_lea.vmem [#allocation8], %s1283
          %1285 = dma.done %s1281, 2048
        $region76: #{tpu_custom_call.1} parent=71 // pred_fallthru
          _
        // Predicated region
        $region77: #{tpu_custom_call.1} parent=71 // pred_check
          %p1286 = pneg %p250
        $region78: #{tpu_custom_call.1} parent=71 // pred_check_branch
          %1288 = sbr.rel (%p1286) target = $region80
        $region79: #{tpu_custom_call.1} parent=71 // pred_region
          %s1289 = sand.u32 %s235, 1
          %s1290 = scalar_lea.sflag [#allocation10], %s1289
          %s1291 = sand.u32 %s235, 1
          %s1292 = smul.addr %s1291, 16
          %s1293 = scalar_lea.vmem [#allocation9], %s1292
          %1294 = dma.done %s1290, 256
        $region80: #{tpu_custom_call.1} parent=71 // pred_fallthru
          _
      $region72: #{tpu_custom_call.1} parent=5 // pred_fallthru
        _
    $region6: #{tpu_custom_call.1} parent=1 // loop_footer
      %s29 = sadd.s32 1, %s25
    $region7: #{tpu_custom_call.1} parent=1 // loop_footer_branch
      %24 = sbr.rel target = $region3
    $region8: #{tpu_custom_call.1} parent=1 // loop_exit
      _
    %1295 = vsyncpa [#allocation3], 1
    %s1296 = scalar_lea.sflag [#allocation3], 1
    %1297 = vsyncpa %s1296, 1
    %1298 = vsyncpa [#allocation6], 1
    %1299 = vsyncpa [#allocation4], 1
    %s1300 = scalar_lea.sflag [#allocation4], 1
    %1301 = vsyncpa %s1300, 1
    %1302 = vsyncpa [#allocation10], 1
    %s1303 = scalar_lea.sflag [#allocation10], 1
    %1304 = vsyncpa %s1303, 1

</llo_original>
